<compile_context>
chip_gen: v5e
topology: v5e:2x2
jax: 0.10.0
libtpu: 0.0.40
codegen_flags: <defaults>
</compile_context>

<pallas_src>
import functools

import jax
import jax.numpy as jnp
from jax.experimental import pallas as pl
from jax.experimental.pallas import tpu as pltpu


def _round_up(n, m):
    return ((n + m - 1) // m) * m


def _largest_divisor_at_most(n, cap):
    cap = max(1, min(n, cap))
    for d in range(cap, 0, -1):
        if n % d == 0:
            return d
    return 1


def _superfield_kernel(mt, n_mid, Hp, inv_num_models, *refs):
    """One grid step: full forward of `mt` ensemble members on one batch tile.

    Grid = (batch_tiles, model_tiles). The model axis is the innermost
    reduction axis: the output block stays resident in VMEM across it and is
    accumulated in-place (zeroed at m==0, scaled by 1/num_models at m==last).
    """
    if n_mid > 0:
        (w_in0, b_in0, w_o0, b_o0, w_mid, b_mid,
         w_fi, b_fi, w_fo, b_fo, x_ref, o_ref) = refs
    else:
        (w_in0, b_in0, w_o0, b_o0,
         w_fi, b_fi, w_fo, b_fo, x_ref, o_ref) = refs
        w_mid = b_mid = None

    m_step = pl.program_id(1)

    @pl.when(m_step == 0)
    def _():
        o_ref[...] = jnp.zeros_like(o_ref)

    bf16, f32 = jnp.bfloat16, jnp.float32
    x = x_ref[...]                                        # (tb, In) bf16

    # Fused first layer across all mt models of this tile: one
    # (tb, In) x (In, mt*Hp) matmul (K = input_dim is tiny; fusing fills the
    # MXU's N dimension instead of paying the K padding mt times).
    h_all = jnp.dot(x, w_in0[...], preferred_element_type=f32) + b_in0[...]
    h_all = jnp.maximum(h_all, 0.0)                       # (tb, mt*Hp) f32

    for j in range(mt):                                   # bounded static unroll
        h = h_all[:, j * Hp:(j + 1) * Hp]
        # SuperTree 0 output projection: hidden -> hidden
        h = jnp.dot(h.astype(bf16), w_o0[j],
                    preferred_element_type=f32) + b_o0[j]
        # SuperTrees 1 .. num_layers-1: hidden -> hidden (ReLU) -> hidden
        for l in range(n_mid):
            h = jnp.maximum(
                jnp.dot(h.astype(bf16), w_mid[j, l, 0],
                        preferred_element_type=f32) + b_mid[j, l, 0], 0.0)
            h = jnp.dot(h.astype(bf16), w_mid[j, l, 1],
                        preferred_element_type=f32) + b_mid[j, l, 1]
        # Final SuperTree: hidden -> hidden (ReLU) -> output, then sigmoid
        h = jnp.maximum(
            jnp.dot(h.astype(bf16), w_fi[j],
                    preferred_element_type=f32) + b_fi[j], 0.0)
        logits = jnp.dot(h.astype(bf16), w_fo[j],
                         preferred_element_type=f32) + b_fo[j]
        # Accumulate into the resident output block (no big live f32 value
        # carried across the whole unroll -> no vreg spill traffic).
        o_ref[...] += jax.nn.sigmoid(logits)

    @pl.when(m_step == pl.num_programs(1) - 1)
    def _():
        o_ref[...] = o_ref[...] * inv_num_models


def pack_superfield_params(params, *, num_models, num_layers,
                           input_dim, hidden_dim, output_dim):
    """One-time host-side packing (keep out of the per-call path).

    Pads hidden/output dims to lane width (128), casts matmul operands to
    bf16 (biases stay f32), and lays the first-layer weight/bias out as
    (input_dim, num_models*Hp) so the kernel can fuse it across models.
    Zero padding is bit-exact for this net (padded columns stay 0 through
    ReLU/matmuls and are sliced off at the end).
    """
    n_mid = num_layers - 1
    Hp = _round_up(hidden_dim, 128)
    Op = _round_up(output_dim, 128)
    f32, bf16 = jnp.float32, jnp.bfloat16

    def padw(a, tgt_shape, dtype):
        pads = [(0, t - s) for s, t in zip(a.shape, tgt_shape)]
        return jnp.pad(a, pads).astype(dtype)

    w_in0 = padw(params["w_in0"], (num_models, input_dim, Hp), bf16)
    b_in0 = padw(params["b_in0"], (num_models, 1, Hp), f32)
    packed = {
        "w_in0_all": jnp.transpose(w_in0, (1, 0, 2)).reshape(
            input_dim, num_models * Hp),
        "b_in0_all": jnp.transpose(b_in0, (1, 0, 2)).reshape(
            1, num_models * Hp),
        "w_o0": padw(params["w_o0"], (num_models, Hp, Hp), bf16),
        "b_o0": padw(params["b_o0"], (num_models, 1, Hp), f32),
        "w_fi": padw(params["w_fi"], (num_models, Hp, Hp), bf16),
        "b_fi": padw(params["b_fi"], (num_models, 1, Hp), f32),
        "w_fo": padw(params["w_fo"], (num_models, Hp, Op), bf16),
        "b_fo": padw(params["b_fo"], (num_models, 1, Op), f32),
    }
    if n_mid > 0:
        packed["w_mid"] = padw(params["w_mid"],
                               (num_models, n_mid, 2, Hp, Hp), bf16)
        packed["b_mid"] = padw(params["b_mid"],
                               (num_models, n_mid, 2, 1, Hp), f32)
    return packed


_RESIDENT_WEIGHT_BUDGET = 40 << 20   # keep resident weights v7x-safe (64 MiB/TC)
_MAX_MODEL_UNROLL = 8                # bound per-step static unroll / code size


def superfield_forward(packed, x, *, num_models, num_layers,
                       input_dim, hidden_dim, output_dim, batch_tile=256):
    n_mid = num_layers - 1
    Hp = _round_up(hidden_dim, 128)
    Op = _round_up(output_dim, 128)
    B = x.shape[0]

    # ---- Batch tiling: >=2 tiles when possible (so both v7x TCs get work),
    # tile picked from ceil(B/n) instead of padding to a full 512-row tile.
    Bp8 = _round_up(max(B, 1), 8)
    n_bt = -(-Bp8 // batch_tile)
    if n_bt == 1 and Bp8 >= 16:
        n_bt = 2
    tb = _round_up(-(-Bp8 // n_bt), 8)
    Bp = tb * n_bt

    # ---- Model tiling: keep as many models resident in VMEM as the budget
    # allows; stream the rest through the inner ("arbitrary") grid axis.
    per_model_bytes = (2 * (input_dim * Hp + (2 + 2 * n_mid) * Hp * Hp + Hp * Op)
                       + 4 * ((3 + 2 * n_mid) * Hp + Op))
    if (num_models <= _MAX_MODEL_UNROLL
            and num_models * per_model_bytes <= _RESIDENT_WEIGHT_BUDGET):
        mt = num_models
    else:
        cap = min(_MAX_MODEL_UNROLL,
                  max(1, (_RESIDENT_WEIGHT_BUDGET // 2) // max(per_model_bytes, 1)))
        mt = _largest_divisor_at_most(num_models, cap)
    n_mt = num_models // mt
    # Weights that are never re-fetched only need a single VMEM buffer.
    w_mode = pl.Buffered(1) if n_mt == 1 else None

    def model_spec(arr):
        block = (mt,) + arr.shape[1:]
        nd = arr.ndim
        return pl.BlockSpec(block,
                            lambda b, m, _nd=nd: (m,) + (0,) * (_nd - 1),
                            pipeline_mode=w_mode)

    in_specs = [
        pl.BlockSpec((input_dim, mt * Hp), lambda b, m: (0, m),
                     pipeline_mode=w_mode),
        pl.BlockSpec((1, mt * Hp), lambda b, m: (0, m),
                     pipeline_mode=w_mode),
        model_spec(packed["w_o0"]), model_spec(packed["b_o0"]),
    ]
    args = [packed["w_in0_all"], packed["b_in0_all"],
            packed["w_o0"], packed["b_o0"]]
    if n_mid > 0:
        in_specs += [model_spec(packed["w_mid"]), model_spec(packed["b_mid"])]
        args += [packed["w_mid"], packed["b_mid"]]
    in_specs += [model_spec(packed["w_fi"]), model_spec(packed["b_fi"]),
                 model_spec(packed["w_fo"]), model_spec(packed["b_fo"])]
    args += [packed["w_fi"], packed["b_fi"], packed["w_fo"], packed["b_fo"]]

    xp = jnp.pad(x, ((0, Bp - B), (0, 0))).astype(jnp.bfloat16)
    in_specs.append(pl.BlockSpec((tb, input_dim), lambda b, m: (b, 0)))
    args.append(xp)

    out_spec = pl.BlockSpec((tb, Op), lambda b, m: (b, 0))
    grid = (Bp // tb, n_mt)

    # ---- Explicit scoped-VMEM budget (defaults are only 16 MiB on v5e and
    # 32 MiB on v6e/v7x): resident weights x buffer count + I/O tile buffers.
    wbuf = 1 if n_mt == 1 else 2
    tile_weight_bytes = mt * per_model_bytes
    io_bytes = 2 * (tb * input_dim * 2) + 2 * (tb * Op * 4)
    vmem_limit = int(min(128 << 20,
                         max(32 << 20,
                             wbuf * tile_weight_bytes + io_bytes + (8 << 20))))

    flops_per_row_per_model = 2 * (input_dim * Hp
                                   + (2 + 2 * n_mid) * Hp * Hp + Hp * Op)
    weight_bytes_total = sum(int(a.size) * a.dtype.itemsize for a in args[:-1])
    cost = pl.CostEstimate(
        flops=int(num_models * Bp * flops_per_row_per_model),
        transcendentals=int(num_models * Bp * output_dim),
        bytes_accessed=int(weight_bytes_total * (1 if n_mt == 1 else Bp // tb)
                           + xp.size * 2 + Bp * Op * 4),
    )

    kernel = functools.partial(_superfield_kernel, mt, n_mid, Hp,
                               1.0 / num_models)

    out = pl.pallas_call(
        kernel,
        out_shape=jax.ShapeDtypeStruct((Bp, Op), jnp.float32),
        grid=grid,
        in_specs=in_specs,
        out_specs=out_spec,
        compiler_params=pltpu.CompilerParams(
            dimension_semantics=("parallel", "arbitrary"),
            vmem_limit_bytes=vmem_limit),
        cost_estimate=cost,
    )(*args)

    return out[:B, :output_dim]


def init_params(key, num_models, num_layers, input_dim, hidden_dim, output_dim):
    """Deterministic PyTorch-Linear-style init (uniform +/- 1/sqrt(fan_in))."""
    n_mid = num_layers - 1
    keys = iter(jax.random.split(key, 64))

    def lin(k, fan_in, fan_out):
        bound = 1.0 / jnp.sqrt(fan_in)
        kw, kb = jax.random.split(k)
        W = jax.random.uniform(kw, (num_models, fan_in, fan_out),
                               jnp.float32, -bound, bound)
        b = jax.random.uniform(kb, (num_models, 1, fan_out),
                               jnp.float32, -bound, bound)
        return W, b

    p = {}
    p["w_in0"], p["b_in0"] = lin(next(keys), input_dim, hidden_dim)
    p["w_o0"], p["b_o0"] = lin(next(keys), hidden_dim, hidden_dim)
    if n_mid > 0:
        wms, bms = [], []
        for _ in range(n_mid):
            w_a, b_a = lin(next(keys), hidden_dim, hidden_dim)
            w_b, b_b = lin(next(keys), hidden_dim, hidden_dim)
            wms.append(jnp.stack([w_a, w_b], axis=1))            # (M,2,H,H)
            bms.append(jnp.stack([b_a, b_b], axis=1))            # (M,2,1,H)
        p["w_mid"] = jnp.stack(wms, axis=1)                      # (M,n_mid,2,H,H)
        p["b_mid"] = jnp.stack(bms, axis=1)                      # (M,n_mid,2,1,H)
    p["w_fi"], p["b_fi"] = lin(next(keys), hidden_dim, hidden_dim)
    p["w_fo"], p["b_fo"] = lin(next(keys), hidden_dim, output_dim)
    return p


def reference_forward(params, x, *, num_models, num_layers, bf16_operands=True):
    """Pure-JAX reference. bf16_operands=True mirrors the kernel's
    bf16-operand / f32-accumulate math; False is the plain-f32 PyTorch math."""
    n_mid = num_layers - 1
    dt = jnp.bfloat16 if bf16_operands else jnp.float32

    def dot(a, w):
        return jnp.dot(a.astype(dt), w.astype(dt),
                       preferred_element_type=jnp.float32)

    acc = jnp.zeros((x.shape[0], params["w_fo"].shape[-1]), jnp.float32)
    for m in range(num_models):
        h = jnp.maximum(dot(x, params["w_in0"][m]) + params["b_in0"][m], 0.0)
        h = dot(h, params["w_o0"][m]) + params["b_o0"][m]
        for l in range(n_mid):
            h = jnp.maximum(dot(h, params["w_mid"][m, l, 0])
                            + params["b_mid"][m, l, 0], 0.0)
            h = dot(h, params["w_mid"][m, l, 1]) + params["b_mid"][m, l, 1]
        h = jnp.maximum(dot(h, params["w_fi"][m]) + params["b_fi"][m], 0.0)
        logits = dot(h, params["w_fo"][m]) + params["b_fo"][m]
        acc = acc + jax.nn.sigmoid(logits)
    return acc * (1.0 / num_models)


if __name__ == "__main__":
    # TODO(synk): inject/train/predict/evaluate are host-side training/eval loops
    # in the PyTorch module; only the forward pass is kernelized.
    num_models, num_layers = 3, 2
    input_dim, hidden_dim, output_dim = 16, 32, 4
    batch = 8

    key = jax.random.PRNGKey(0)
    kp, kx = jax.random.split(key)
    params = init_params(kp, num_models, num_layers,
                         input_dim, hidden_dim, output_dim)
    x = jax.random.normal(kx, (batch, input_dim), dtype=jnp.float32)

    packed = pack_superfield_params(
        params, num_models=num_models, num_layers=num_layers,
        input_dim=input_dim, hidden_dim=hidden_dim, output_dim=output_dim)

    out = superfield_forward(
        packed, x,
        num_models=num_models, num_layers=num_layers,
        input_dim=input_dim, hidden_dim=hidden_dim, output_dim=output_dim)
    out = jax.block_until_ready(out)

    ref_bf16 = reference_forward(params, x, num_models=num_models,
                                 num_layers=num_layers, bf16_operands=True)
    ref_f32 = reference_forward(params, x, num_models=num_models,
                                num_layers=num_layers, bf16_operands=False)
    assert out.shape == (batch, output_dim)
    assert jnp.allclose(out, ref_bf16, atol=1e-4, rtol=1e-4), \
        "mismatch vs bf16-matched reference"
    assert jnp.allclose(out, ref_f32, atol=5e-2, rtol=5e-2), \
        "mismatch vs f32 reference"

    print("KERNEL_OK")
</pallas_src>

<mosaic_0001>
module attributes {stable_mosaic.version = 11 : i64} {
  func.func @_superfield_kernel(%arg0: i32, %arg1: i32, %arg2: memref<16x384xbf16, #tpu.memory_space<vmem>>, %arg3: memref<1x384xf32, #tpu.memory_space<vmem>>, %arg4: memref<3x128x128xbf16, #tpu.memory_space<vmem>>, %arg5: memref<3x1x128xf32, #tpu.memory_space<vmem>>, %arg6: memref<3x1x2x128x128xbf16, #tpu.memory_space<vmem>>, %arg7: memref<3x1x2x1x128xf32, #tpu.memory_space<vmem>>, %arg8: memref<3x128x128xbf16, #tpu.memory_space<vmem>>, %arg9: memref<3x1x128xf32, #tpu.memory_space<vmem>>, %arg10: memref<3x128x128xbf16, #tpu.memory_space<vmem>>, %arg11: memref<3x1x128xf32, #tpu.memory_space<vmem>>, %arg12: memref<8x16xbf16, #tpu.memory_space<vmem>>, %arg13: memref<8x128xf32, #tpu.memory_space<vmem>>) attributes {dimension_semantics = [#tpu.dimension_semantics<parallel>, #tpu.dimension_semantics<arbitrary>], iteration_bounds = array<i64: 1, 1>, scalar_prefetch = 0 : i64, scratch_operands = 0 : i64, tpu.core_type = #tpu.core_type<tc>, window_params = [{pipeline_mode = #tpu.pipeline_mode<synchronous>, transform_indices = @transform_0, window_bounds = array<i64: 16, 384>}, {pipeline_mode = #tpu.pipeline_mode<synchronous>, transform_indices = @transform_1, window_bounds = array<i64: 1, 384>}, {pipeline_mode = #tpu.pipeline_mode<synchronous>, transform_indices = @transform_2, window_bounds = array<i64: 3, 128, 128>}, {pipeline_mode = #tpu.pipeline_mode<synchronous>, transform_indices = @transform_3, window_bounds = array<i64: 3, 1, 128>}, {pipeline_mode = #tpu.pipeline_mode<synchronous>, transform_indices = @transform_4, window_bounds = array<i64: 3, 1, 2, 128, 128>}, {pipeline_mode = #tpu.pipeline_mode<synchronous>, transform_indices = @transform_5, window_bounds = array<i64: 3, 1, 2, 1, 128>}, {pipeline_mode = #tpu.pipeline_mode<synchronous>, transform_indices = @transform_6, window_bounds = array<i64: 3, 128, 128>}, {pipeline_mode = #tpu.pipeline_mode<synchronous>, transform_indices = @transform_7, window_bounds = array<i64: 3, 1, 128>}, {pipeline_mode = #tpu.pipeline_mode<synchronous>, transform_indices = @transform_8, window_bounds = array<i64: 3, 128, 128>}, {pipeline_mode = #tpu.pipeline_mode<synchronous>, transform_indices = @transform_9, window_bounds = array<i64: 3, 1, 128>}, {transform_indices = @transform_10, window_bounds = array<i64: 8, 16>}, {transform_indices = @transform_11, window_bounds = array<i64: 8, 128>}]} {
    %c0_i32 = arith.constant 0 : i32
    %0 = arith.cmpi eq, %arg1, %c0_i32 : i32
    %1 = arith.extui %0 : i1 to i32
    %c0_i32_0 = arith.constant 0 : i32
    %2 = arith.cmpi ne, %1, %c0_i32_0 : i32
    scf.if %2 {
      %cst_157 = arith.constant 0.000000e+00 : f32
      %173 = vector.broadcast %cst_157 : f32 to vector<8x128xf32>
      %c0_158 = arith.constant 0 : index
      %c0_159 = arith.constant 0 : index
      %174 = vector.load %arg13[%c0_158, %c0_159] : memref<8x128xf32, #tpu.memory_space<vmem>>, vector<8x128xf32>
      tpu.vector_store %arg13[%c0_158, %c0_159], %173 {strides = array<i32>} : memref<8x128xf32, #tpu.memory_space<vmem>>, vector<8x128xf32>,
    } else {
    }
    %c0 = arith.constant 0 : index
    %c0_1 = arith.constant 0 : index
    %3 = vector.load %arg12[%c0, %c0_1] : memref<8x16xbf16, #tpu.memory_space<vmem>>, vector<8x16xbf16>
    %c0_2 = arith.constant 0 : index
    %c0_3 = arith.constant 0 : index
    %4 = vector.load %arg2[%c0_2, %c0_3] : memref<16x384xbf16, #tpu.memory_space<vmem>>, vector<16x384xbf16>
    %cst = arith.constant dense<0.000000e+00> : vector<8x384xf32>
    %5 = tpu.matmul %3, %4, %cst {dimension_numbers = #tpu.dot_dimension_numbers<[1], [0], [0], [1], [0, 0, 1, 1], [], []>} : vector<8x16xbf16>, vector<16x384xbf16>, vector<8x384xf32> -> vector<8x384xf32>
    %c0_4 = arith.constant 0 : index
    %c0_5 = arith.constant 0 : index
    %6 = vector.load %arg3[%c0_4, %c0_5] : memref<1x384xf32, #tpu.memory_space<vmem>>, vector<1x384xf32>
    %7 = vector.broadcast %6 : vector<1x384xf32> to vector<8x384xf32>
    %8 = arith.addf %5, %7 : vector<8x384xf32>
    %cst_6 = arith.constant 0.000000e+00 : f32
    %9 = vector.broadcast %cst_6 : f32 to vector<8x384xf32>
    %10 = arith.maximumf %8, %9 : vector<8x384xf32>
    %11 = vector.extract_strided_slice %10 {offsets = [0, 0], sizes = [8, 128], strides = [1, 1]} : vector<8x384xf32> to vector<8x128xf32>
    %12 = arith.truncf %11 : vector<8x128xf32> to vector<8x128xbf16>
    %c0_7 = arith.constant 0 : index
    %c0_8 = arith.constant 0 : index
    %c0_9 = arith.constant 0 : index
    %13 = vector.load %arg4[%c0_7, %c0_8, %c0_9] : memref<3x128x128xbf16, #tpu.memory_space<vmem>>, vector<1x128x128xbf16>
    %14 = vector.shape_cast %13 : vector<1x128x128xbf16> to vector<128x128xbf16>
    %cst_10 = arith.constant dense<0.000000e+00> : vector<8x128xf32>
    %15 = tpu.matmul %12, %14, %cst_10 {dimension_numbers = #tpu.dot_dimension_numbers<[1], [0], [0], [1], [0, 0, 1, 1], [], []>} : vector<8x128xbf16>, vector<128x128xbf16>, vector<8x128xf32> -> vector<8x128xf32>
    %c0_11 = arith.constant 0 : index
    %c0_12 = arith.constant 0 : index
    %c0_13 = arith.constant 0 : index
    %16 = vector.load %arg5[%c0_11, %c0_12, %c0_13] : memref<3x1x128xf32, #tpu.memory_space<vmem>>, vector<1x1x128xf32>
    %17 = vector.shape_cast %16 : vector<1x1x128xf32> to vector<1x128xf32>
    %18 = vector.broadcast %17 : vector<1x128xf32> to vector<8x128xf32>
    %19 = arith.addf %15, %18 : vector<8x128xf32>
    %20 = arith.truncf %19 : vector<8x128xf32> to vector<8x128xbf16>
    %c0_14 = arith.constant 0 : index
    %c0_15 = arith.constant 0 : index
    %c0_16 = arith.constant 0 : index
    %c0_17 = arith.constant 0 : index
    %c0_18 = arith.constant 0 : index
    %21 = vector.load %arg6[%c0_14, %c0_15, %c0_16, %c0_17, %c0_18] : memref<3x1x2x128x128xbf16, #tpu.memory_space<vmem>>, vector<1x1x1x128x128xbf16>
    %22 = vector.shape_cast %21 : vector<1x1x1x128x128xbf16> to vector<128x128xbf16>
    %cst_19 = arith.constant dense<0.000000e+00> : vector<8x128xf32>
    %23 = tpu.matmul %20, %22, %cst_19 {dimension_numbers = #tpu.dot_dimension_numbers<[1], [0], [0], [1], [0, 0, 1, 1], [], []>} : vector<8x128xbf16>, vector<128x128xbf16>, vector<8x128xf32> -> vector<8x128xf32>
    %c0_20 = arith.constant 0 : index
    %c0_21 = arith.constant 0 : index
    %c0_22 = arith.constant 0 : index
    %c0_23 = arith.constant 0 : index
    %c0_24 = arith.constant 0 : index
    %24 = vector.load %arg7[%c0_20, %c0_21, %c0_22, %c0_23, %c0_24] : memref<3x1x2x1x128xf32, #tpu.memory_space<vmem>>, vector<1x1x1x1x128xf32>
    %25 = vector.shape_cast %24 : vector<1x1x1x1x128xf32> to vector<1x128xf32>
    %26 = vector.broadcast %25 : vector<1x128xf32> to vector<8x128xf32>
    %27 = arith.addf %23, %26 : vector<8x128xf32>
    %cst_25 = arith.constant 0.000000e+00 : f32
    %28 = vector.broadcast %cst_25 : f32 to vector<8x128xf32>
    %29 = arith.maximumf %27, %28 : vector<8x128xf32>
    %30 = arith.truncf %29 : vector<8x128xf32> to vector<8x128xbf16>
    %c0_26 = arith.constant 0 : index
    %c0_27 = arith.constant 0 : index
    %c1 = arith.constant 1 : index
    %c0_28 = arith.constant 0 : index
    %c0_29 = arith.constant 0 : index
    %31 = vector.load %arg6[%c0_26, %c0_27, %c1, %c0_28, %c0_29] : memref<3x1x2x128x128xbf16, #tpu.memory_space<vmem>>, vector<1x1x1x128x128xbf16>
    %32 = vector.shape_cast %31 : vector<1x1x1x128x128xbf16> to vector<128x128xbf16>
    %cst_30 = arith.constant dense<0.000000e+00> : vector<8x128xf32>
    %33 = tpu.matmul %30, %32, %cst_30 {dimension_numbers = #tpu.dot_dimension_numbers<[1], [0], [0], [1], [0, 0, 1, 1], [], []>} : vector<8x128xbf16>, vector<128x128xbf16>, vector<8x128xf32> -> vector<8x128xf32>
    %c0_31 = arith.constant 0 : index
    %c0_32 = arith.constant 0 : index
    %c1_33 = arith.constant 1 : index
    %c0_34 = arith.constant 0 : index
    %c0_35 = arith.constant 0 : index
    %34 = vector.load %arg7[%c0_31, %c0_32, %c1_33, %c0_34, %c0_35] : memref<3x1x2x1x128xf32, #tpu.memory_space<vmem>>, vector<1x1x1x1x128xf32>
    %35 = vector.shape_cast %34 : vector<1x1x1x1x128xf32> to vector<1x128xf32>
    %36 = vector.broadcast %35 : vector<1x128xf32> to vector<8x128xf32>
    %37 = arith.addf %33, %36 : vector<8x128xf32>
    %38 = arith.truncf %37 : vector<8x128xf32> to vector<8x128xbf16>
    %c0_36 = arith.constant 0 : index
    %c0_37 = arith.constant 0 : index
    %c0_38 = arith.constant 0 : index
    %39 = vector.load %arg8[%c0_36, %c0_37, %c0_38] : memref<3x128x128xbf16, #tpu.memory_space<vmem>>, vector<1x128x128xbf16>
    %40 = vector.shape_cast %39 : vector<1x128x128xbf16> to vector<128x128xbf16>
    %cst_39 = arith.constant dense<0.000000e+00> : vector<8x128xf32>
    %41 = tpu.matmul %38, %40, %cst_39 {dimension_numbers = #tpu.dot_dimension_numbers<[1], [0], [0], [1], [0, 0, 1, 1], [], []>} : vector<8x128xbf16>, vector<128x128xbf16>, vector<8x128xf32> -> vector<8x128xf32>
    %c0_40 = arith.constant 0 : index
    %c0_41 = arith.constant 0 : index
    %c0_42 = arith.constant 0 : index
    %42 = vector.load %arg9[%c0_40, %c0_41, %c0_42] : memref<3x1x128xf32, #tpu.memory_space<vmem>>, vector<1x1x128xf32>
    %43 = vector.shape_cast %42 : vector<1x1x128xf32> to vector<1x128xf32>
    %44 = vector.broadcast %43 : vector<1x128xf32> to vector<8x128xf32>
    %45 = arith.addf %41, %44 : vector<8x128xf32>
    %cst_43 = arith.constant 0.000000e+00 : f32
    %46 = vector.broadcast %cst_43 : f32 to vector<8x128xf32>
    %47 = arith.maximumf %45, %46 : vector<8x128xf32>
    %48 = arith.truncf %47 : vector<8x128xf32> to vector<8x128xbf16>
    %c0_44 = arith.constant 0 : index
    %c0_45 = arith.constant 0 : index
    %c0_46 = arith.constant 0 : index
    %49 = vector.load %arg10[%c0_44, %c0_45, %c0_46] : memref<3x128x128xbf16, #tpu.memory_space<vmem>>, vector<1x128x128xbf16>
    %50 = vector.shape_cast %49 : vector<1x128x128xbf16> to vector<128x128xbf16>
    %cst_47 = arith.constant dense<0.000000e+00> : vector<8x128xf32>
    %51 = tpu.matmul %48, %50, %cst_47 {dimension_numbers = #tpu.dot_dimension_numbers<[1], [0], [0], [1], [0, 0, 1, 1], [], []>} : vector<8x128xbf16>, vector<128x128xbf16>, vector<8x128xf32> -> vector<8x128xf32>
    %c0_48 = arith.constant 0 : index
    %c0_49 = arith.constant 0 : index
    %c0_50 = arith.constant 0 : index
    %52 = vector.load %arg11[%c0_48, %c0_49, %c0_50] : memref<3x1x128xf32, #tpu.memory_space<vmem>>, vector<1x1x128xf32>
    %53 = vector.shape_cast %52 : vector<1x1x128xf32> to vector<1x128xf32>
    %54 = vector.broadcast %53 : vector<1x128xf32> to vector<8x128xf32>
    %55 = arith.addf %51, %54 : vector<8x128xf32>
    %c0_51 = arith.constant 0 : index
    %c0_52 = arith.constant 0 : index
    %56 = vector.load %arg13[%c0_51, %c0_52] : memref<8x128xf32, #tpu.memory_space<vmem>>, vector<8x128xf32>
    %57 = arith.negf %55 : vector<8x128xf32>
    %58 = math.exp %57 : vector<8x128xf32>
    %cst_53 = arith.constant 1.000000e+00 : f32
    %59 = vector.broadcast %cst_53 : f32 to vector<8x128xf32>
    %60 = arith.addf %59, %58 : vector<8x128xf32>
    %61 = arith.divf %59, %60 : vector<8x128xf32>
    %62 = arith.addf %56, %61 : vector<8x128xf32>
    %c0_54 = arith.constant 0 : index
    %c0_55 = arith.constant 0 : index
    %63 = vector.load %arg13[%c0_54, %c0_55] : memref<8x128xf32, #tpu.memory_space<vmem>>, vector<8x128xf32>
    tpu.vector_store %arg13[%c0_54, %c0_55], %62 {strides = array<i32>} : memref<8x128xf32, #tpu.memory_space<vmem>>, vector<8x128xf32>,
    %64 = vector.extract_strided_slice %10 {offsets = [0, 128], sizes = [8, 128], strides = [1, 1]} : vector<8x384xf32> to vector<8x128xf32>
    %65 = arith.truncf %64 : vector<8x128xf32> to vector<8x128xbf16>
    %c1_56 = arith.constant 1 : index
    %c0_57 = arith.constant 0 : index
    %c0_58 = arith.constant 0 : index
    %66 = vector.load %arg4[%c1_56, %c0_57, %c0_58] : memref<3x128x128xbf16, #tpu.memory_space<vmem>>, vector<1x128x128xbf16>
    %67 = vector.shape_cast %66 : vector<1x128x128xbf16> to vector<128x128xbf16>
    %cst_59 = arith.constant dense<0.000000e+00> : vector<8x128xf32>
    %68 = tpu.matmul %65, %67, %cst_59 {dimension_numbers = #tpu.dot_dimension_numbers<[1], [0], [0], [1], [0, 0, 1, 1], [], []>} : vector<8x128xbf16>, vector<128x128xbf16>, vector<8x128xf32> -> vector<8x128xf32>
    %c1_60 = arith.constant 1 : index
    %c0_61 = arith.constant 0 : index
    %c0_62 = arith.constant 0 : index
    %69 = vector.load %arg5[%c1_60, %c0_61, %c0_62] : memref<3x1x128xf32, #tpu.memory_space<vmem>>, vector<1x1x128xf32>
    %70 = vector.shape_cast %69 : vector<1x1x128xf32> to vector<1x128xf32>
    %71 = vector.broadcast %70 : vector<1x128xf32> to vector<8x128xf32>
    %72 = arith.addf %68, %71 : vector<8x128xf32>
    %73 = arith.truncf %72 : vector<8x128xf32> to vector<8x128xbf16>
    %c1_63 = arith.constant 1 : index
    %c0_64 = arith.constant 0 : index
    %c0_65 = arith.constant 0 : index
    %c0_66 = arith.constant 0 : index
    %c0_67 = arith.constant 0 : index
    %74 = vector.load %arg6[%c1_63, %c0_64, %c0_65, %c0_66, %c0_67] : memref<3x1x2x128x128xbf16, #tpu.memory_space<vmem>>, vector<1x1x1x128x128xbf16>
    %75 = vector.shape_cast %74 : vector<1x1x1x128x128xbf16> to vector<128x128xbf16>
    %cst_68 = arith.constant dense<0.000000e+00> : vector<8x128xf32>
    %76 = tpu.matmul %73, %75, %cst_68 {dimension_numbers = #tpu.dot_dimension_numbers<[1], [0], [0], [1], [0, 0, 1, 1], [], []>} : vector<8x128xbf16>, vector<128x128xbf16>, vector<8x128xf32> -> vector<8x128xf32>
    %c1_69 = arith.constant 1 : index
    %c0_70 = arith.constant 0 : index
    %c0_71 = arith.constant 0 : index
    %c0_72 = arith.constant 0 : index
    %c0_73 = arith.constant 0 : index
    %77 = vector.load %arg7[%c1_69, %c0_70, %c0_71, %c0_72, %c0_73] : memref<3x1x2x1x128xf32, #tpu.memory_space<vmem>>, vector<1x1x1x1x128xf32>
    %78 = vector.shape_cast %77 : vector<1x1x1x1x128xf32> to vector<1x128xf32>
    %79 = vector.broadcast %78 : vector<1x128xf32> to vector<8x128xf32>
    %80 = arith.addf %76, %79 : vector<8x128xf32>
    %cst_74 = arith.constant 0.000000e+00 : f32
    %81 = vector.broadcast %cst_74 : f32 to vector<8x128xf32>
    %82 = arith.maximumf %80, %81 : vector<8x128xf32>
    %83 = arith.truncf %82 : vector<8x128xf32> to vector<8x128xbf16>
    %c1_75 = arith.constant 1 : index
    %c0_76 = arith.constant 0 : index
    %c1_77 = arith.constant 1 : index
    %c0_78 = arith.constant 0 : index
    %c0_79 = arith.constant 0 : index
    %84 = vector.load %arg6[%c1_75, %c0_76, %c1_77, %c0_78, %c0_79] : memref<3x1x2x128x128xbf16, #tpu.memory_space<vmem>>, vector<1x1x1x128x128xbf16>
    %85 = vector.shape_cast %84 : vector<1x1x1x128x128xbf16> to vector<128x128xbf16>
    %cst_80 = arith.constant dense<0.000000e+00> : vector<8x128xf32>
    %86 = tpu.matmul %83, %85, %cst_80 {dimension_numbers = #tpu.dot_dimension_numbers<[1], [0], [0], [1], [0, 0, 1, 1], [], []>} : vector<8x128xbf16>, vector<128x128xbf16>, vector<8x128xf32> -> vector<8x128xf32>
    %c1_81 = arith.constant 1 : index
    %c0_82 = arith.constant 0 : index
    %c1_83 = arith.constant 1 : index
    %c0_84 = arith.constant 0 : index
    %c0_85 = arith.constant 0 : index
    %87 = vector.load %arg7[%c1_81, %c0_82, %c1_83, %c0_84, %c0_85] : memref<3x1x2x1x128xf32, #tpu.memory_space<vmem>>, vector<1x1x1x1x128xf32>
    %88 = vector.shape_cast %87 : vector<1x1x1x1x128xf32> to vector<1x128xf32>
    %89 = vector.broadcast %88 : vector<1x128xf32> to vector<8x128xf32>
    %90 = arith.addf %86, %89 : vector<8x128xf32>
    %91 = arith.truncf %90 : vector<8x128xf32> to vector<8x128xbf16>
    %c1_86 = arith.constant 1 : index
    %c0_87 = arith.constant 0 : index
    %c0_88 = arith.constant 0 : index
    %92 = vector.load %arg8[%c1_86, %c0_87, %c0_88] : memref<3x128x128xbf16, #tpu.memory_space<vmem>>, vector<1x128x128xbf16>
    %93 = vector.shape_cast %92 : vector<1x128x128xbf16> to vector<128x128xbf16>
    %cst_89 = arith.constant dense<0.000000e+00> : vector<8x128xf32>
    %94 = tpu.matmul %91, %93, %cst_89 {dimension_numbers = #tpu.dot_dimension_numbers<[1], [0], [0], [1], [0, 0, 1, 1], [], []>} : vector<8x128xbf16>, vector<128x128xbf16>, vector<8x128xf32> -> vector<8x128xf32>
    %c1_90 = arith.constant 1 : index
    %c0_91 = arith.constant 0 : index
    %c0_92 = arith.constant 0 : index
    %95 = vector.load %arg9[%c1_90, %c0_91, %c0_92] : memref<3x1x128xf32, #tpu.memory_space<vmem>>, vector<1x1x128xf32>
    %96 = vector.shape_cast %95 : vector<1x1x128xf32> to vector<1x128xf32>
    %97 = vector.broadcast %96 : vector<1x128xf32> to vector<8x128xf32>
    %98 = arith.addf %94, %97 : vector<8x128xf32>
    %cst_93 = arith.constant 0.000000e+00 : f32
    %99 = vector.broadcast %cst_93 : f32 to vector<8x128xf32>
    %100 = arith.maximumf %98, %99 : vector<8x128xf32>
    %101 = arith.truncf %100 : vector<8x128xf32> to vector<8x128xbf16>
    %c1_94 = arith.constant 1 : index
    %c0_95 = arith.constant 0 : index
    %c0_96 = arith.constant 0 : index
    %102 = vector.load %arg10[%c1_94, %c0_95, %c0_96] : memref<3x128x128xbf16, #tpu.memory_space<vmem>>, vector<1x128x128xbf16>
    %103 = vector.shape_cast %102 : vector<1x128x128xbf16> to vector<128x128xbf16>
    %cst_97 = arith.constant dense<0.000000e+00> : vector<8x128xf32>
    %104 = tpu.matmul %101, %103, %cst_97 {dimension_numbers = #tpu.dot_dimension_numbers<[1], [0], [0], [1], [0, 0, 1, 1], [], []>} : vector<8x128xbf16>, vector<128x128xbf16>, vector<8x128xf32> -> vector<8x128xf32>
    %c1_98 = arith.constant 1 : index
    %c0_99 = arith.constant 0 : index
    %c0_100 = arith.constant 0 : index
    %105 = vector.load %arg11[%c1_98, %c0_99, %c0_100] : memref<3x1x128xf32, #tpu.memory_space<vmem>>, vector<1x1x128xf32>
    %106 = vector.shape_cast %105 : vector<1x1x128xf32> to vector<1x128xf32>
    %107 = vector.broadcast %106 : vector<1x128xf32> to vector<8x128xf32>
    %108 = arith.addf %104, %107 : vector<8x128xf32>
    %c0_101 = arith.constant 0 : index
    %c0_102 = arith.constant 0 : index
    %109 = vector.load %arg13[%c0_101, %c0_102] : memref<8x128xf32, #tpu.memory_space<vmem>>, vector<8x128xf32>
    %110 = arith.negf %108 : vector<8x128xf32>
    %111 = math.exp %110 : vector<8x128xf32>
    %cst_103 = arith.constant 1.000000e+00 : f32
    %112 = vector.broadcast %cst_103 : f32 to vector<8x128xf32>
    %113 = arith.addf %112, %111 : vector<8x128xf32>
    %114 = arith.divf %112, %113 : vector<8x128xf32>
    %115 = arith.addf %109, %114 : vector<8x128xf32>
    %c0_104 = arith.constant 0 : index
    %c0_105 = arith.constant 0 : index
    %116 = vector.load %arg13[%c0_104, %c0_105] : memref<8x128xf32, #tpu.memory_space<vmem>>, vector<8x128xf32>
    tpu.vector_store %arg13[%c0_104, %c0_105], %115 {strides = array<i32>} : memref<8x128xf32, #tpu.memory_space<vmem>>, vector<8x128xf32>,
    %117 = vector.extract_strided_slice %10 {offsets = [0, 256], sizes = [8, 128], strides = [1, 1]} : vector<8x384xf32> to vector<8x128xf32>
    %118 = arith.truncf %117 : vector<8x128xf32> to vector<8x128xbf16>
    %c2 = arith.constant 2 : index
    %c0_106 = arith.constant 0 : index
    %c0_107 = arith.constant 0 : index
    %119 = vector.load %arg4[%c2, %c0_106, %c0_107] : memref<3x128x128xbf16, #tpu.memory_space<vmem>>, vector<1x128x128xbf16>
    %120 = vector.shape_cast %119 : vector<1x128x128xbf16> to vector<128x128xbf16>
    %cst_108 = arith.constant dense<0.000000e+00> : vector<8x128xf32>
    %121 = tpu.matmul %118, %120, %cst_108 {dimension_numbers = #tpu.dot_dimension_numbers<[1], [0], [0], [1], [0, 0, 1, 1], [], []>} : vector<8x128xbf16>, vector<128x128xbf16>, vector<8x128xf32> -> vector<8x128xf32>
    %c2_109 = arith.constant 2 : index
    %c0_110 = arith.constant 0 : index
    %c0_111 = arith.constant 0 : index
    %122 = vector.load %arg5[%c2_109, %c0_110, %c0_111] : memref<3x1x128xf32, #tpu.memory_space<vmem>>, vector<1x1x128xf32>
    %123 = vector.shape_cast %122 : vector<1x1x128xf32> to vector<1x128xf32>
    %124 = vector.broadcast %123 : vector<1x128xf32> to vector<8x128xf32>
    %125 = arith.addf %121, %124 : vector<8x128xf32>
    %126 = arith.truncf %125 : vector<8x128xf32> to vector<8x128xbf16>
    %c2_112 = arith.constant 2 : index
    %c0_113 = arith.constant 0 : index
    %c0_114 = arith.constant 0 : index
    %c0_115 = arith.constant 0 : index
    %c0_116 = arith.constant 0 : index
    %127 = vector.load %arg6[%c2_112, %c0_113, %c0_114, %c0_115, %c0_116] : memref<3x1x2x128x128xbf16, #tpu.memory_space<vmem>>, vector<1x1x1x128x128xbf16>
    %128 = vector.shape_cast %127 : vector<1x1x1x128x128xbf16> to vector<128x128xbf16>
    %cst_117 = arith.constant dense<0.000000e+00> : vector<8x128xf32>
    %129 = tpu.matmul %126, %128, %cst_117 {dimension_numbers = #tpu.dot_dimension_numbers<[1], [0], [0], [1], [0, 0, 1, 1], [], []>} : vector<8x128xbf16>, vector<128x128xbf16>, vector<8x128xf32> -> vector<8x128xf32>
    %c2_118 = arith.constant 2 : index
    %c0_119 = arith.constant 0 : index
    %c0_120 = arith.constant 0 : index
    %c0_121 = arith.constant 0 : index
    %c0_122 = arith.constant 0 : index
    %130 = vector.load %arg7[%c2_118, %c0_119, %c0_120, %c0_121, %c0_122] : memref<3x1x2x1x128xf32, #tpu.memory_space<vmem>>, vector<1x1x1x1x128xf32>
    %131 = vector.shape_cast %130 : vector<1x1x1x1x128xf32> to vector<1x128xf32>
    %132 = vector.broadcast %131 : vector<1x128xf32> to vector<8x128xf32>
    %133 = arith.addf %129, %132 : vector<8x128xf32>
    %cst_123 = arith.constant 0.000000e+00 : f32
    %134 = vector.broadcast %cst_123 : f32 to vector<8x128xf32>
    %135 = arith.maximumf %133, %134 : vector<8x128xf32>
    %136 = arith.truncf %135 : vector<8x128xf32> to vector<8x128xbf16>
    %c2_124 = arith.constant 2 : index
    %c0_125 = arith.constant 0 : index
    %c1_126 = arith.constant 1 : index
    %c0_127 = arith.constant 0 : index
    %c0_128 = arith.constant 0 : index
    %137 = vector.load %arg6[%c2_124, %c0_125, %c1_126, %c0_127, %c0_128] : memref<3x1x2x128x128xbf16, #tpu.memory_space<vmem>>, vector<1x1x1x128x128xbf16>
    %138 = vector.shape_cast %137 : vector<1x1x1x128x128xbf16> to vector<128x128xbf16>
    %cst_129 = arith.constant dense<0.000000e+00> : vector<8x128xf32>
    %139 = tpu.matmul %136, %138, %cst_129 {dimension_numbers = #tpu.dot_dimension_numbers<[1], [0], [0], [1], [0, 0, 1, 1], [], []>} : vector<8x128xbf16>, vector<128x128xbf16>, vector<8x128xf32> -> vector<8x128xf32>
    %c2_130 = arith.constant 2 : index
    %c0_131 = arith.constant 0 : index
    %c1_132 = arith.constant 1 : index
    %c0_133 = arith.constant 0 : index
    %c0_134 = arith.constant 0 : index
    %140 = vector.load %arg7[%c2_130, %c0_131, %c1_132, %c0_133, %c0_134] : memref<3x1x2x1x128xf32, #tpu.memory_space<vmem>>, vector<1x1x1x1x128xf32>
    %141 = vector.shape_cast %140 : vector<1x1x1x1x128xf32> to vector<1x128xf32>
    %142 = vector.broadcast %141 : vector<1x128xf32> to vector<8x128xf32>
    %143 = arith.addf %139, %142 : vector<8x128xf32>
    %144 = arith.truncf %143 : vector<8x128xf32> to vector<8x128xbf16>
    %c2_135 = arith.constant 2 : index
    %c0_136 = arith.constant 0 : index
    %c0_137 = arith.constant 0 : index
    %145 = vector.load %arg8[%c2_135, %c0_136, %c0_137] : memref<3x128x128xbf16, #tpu.memory_space<vmem>>, vector<1x128x128xbf16>
    %146 = vector.shape_cast %145 : vector<1x128x128xbf16> to vector<128x128xbf16>
    %cst_138 = arith.constant dense<0.000000e+00> : vector<8x128xf32>
    %147 = tpu.matmul %144, %146, %cst_138 {dimension_numbers = #tpu.dot_dimension_numbers<[1], [0], [0], [1], [0, 0, 1, 1], [], []>} : vector<8x128xbf16>, vector<128x128xbf16>, vector<8x128xf32> -> vector<8x128xf32>
    %c2_139 = arith.constant 2 : index
    %c0_140 = arith.constant 0 : index
    %c0_141 = arith.constant 0 : index
    %148 = vector.load %arg9[%c2_139, %c0_140, %c0_141] : memref<3x1x128xf32, #tpu.memory_space<vmem>>, vector<1x1x128xf32>
    %149 = vector.shape_cast %148 : vector<1x1x128xf32> to vector<1x128xf32>
    %150 = vector.broadcast %149 : vector<1x128xf32> to vector<8x128xf32>
    %151 = arith.addf %147, %150 : vector<8x128xf32>
    %cst_142 = arith.constant 0.000000e+00 : f32
    %152 = vector.broadcast %cst_142 : f32 to vector<8x128xf32>
    %153 = arith.maximumf %151, %152 : vector<8x128xf32>
    %154 = arith.truncf %153 : vector<8x128xf32> to vector<8x128xbf16>
    %c2_143 = arith.constant 2 : index
    %c0_144 = arith.constant 0 : index
    %c0_145 = arith.constant 0 : index
    %155 = vector.load %arg10[%c2_143, %c0_144, %c0_145] : memref<3x128x128xbf16, #tpu.memory_space<vmem>>, vector<1x128x128xbf16>
    %156 = vector.shape_cast %155 : vector<1x128x128xbf16> to vector<128x128xbf16>
    %cst_146 = arith.constant dense<0.000000e+00> : vector<8x128xf32>
    %157 = tpu.matmul %154, %156, %cst_146 {dimension_numbers = #tpu.dot_dimension_numbers<[1], [0], [0], [1], [0, 0, 1, 1], [], []>} : vector<8x128xbf16>, vector<128x128xbf16>, vector<8x128xf32> -> vector<8x128xf32>
    %c2_147 = arith.constant 2 : index
    %c0_148 = arith.constant 0 : index
    %c0_149 = arith.constant 0 : index
    %158 = vector.load %arg11[%c2_147, %c0_148, %c0_149] : memref<3x1x128xf32, #tpu.memory_space<vmem>>, vector<1x1x128xf32>
    %159 = vector.shape_cast %158 : vector<1x1x128xf32> to vector<1x128xf32>
    %160 = vector.broadcast %159 : vector<1x128xf32> to vector<8x128xf32>
    %161 = arith.addf %157, %160 : vector<8x128xf32>
    %c0_150 = arith.constant 0 : index
    %c0_151 = arith.constant 0 : index
    %162 = vector.load %arg13[%c0_150, %c0_151] : memref<8x128xf32, #tpu.memory_space<vmem>>, vector<8x128xf32>
    %163 = arith.negf %161 : vector<8x128xf32>
    %164 = math.exp %163 : vector<8x128xf32>
    %cst_152 = arith.constant 1.000000e+00 : f32
    %165 = vector.broadcast %cst_152 : f32 to vector<8x128xf32>
    %166 = arith.addf %165, %164 : vector<8x128xf32>
    %167 = arith.divf %165, %166 : vector<8x128xf32>
    %168 = arith.addf %162, %167 : vector<8x128xf32>
    %c0_153 = arith.constant 0 : index
    %c0_154 = arith.constant 0 : index
    %169 = vector.load %arg13[%c0_153, %c0_154] : memref<8x128xf32, #tpu.memory_space<vmem>>, vector<8x128xf32>
    tpu.vector_store %arg13[%c0_153, %c0_154], %168 {strides = array<i32>} : memref<8x128xf32, #tpu.memory_space<vmem>>, vector<8x128xf32>,
    %c0_i32_155 = arith.constant 0 : i32
    %170 = arith.cmpi eq, %arg1, %c0_i32_155 : i32
    %171 = arith.extui %170 : i1 to i32
    %c0_i32_156 = arith.constant 0 : i32
    %172 = arith.cmpi ne, %171, %c0_i32_156 : i32
    scf.if %172 {
      %c0_157 = arith.constant 0 : index
      %c0_158 = arith.constant 0 : index
      %173 = vector.load %arg13[%c0_157, %c0_158] : memref<8x128xf32, #tpu.memory_space<vmem>>, vector<8x128xf32>
      %cst_159 = arith.constant 0.333333343 : f32
      %174 = vector.broadcast %cst_159 : f32 to vector<8x128xf32>
      %175 = arith.mulf %173, %174 : vector<8x128xf32>
      %c0_160 = arith.constant 0 : index
      %c0_161 = arith.constant 0 : index
      %176 = vector.load %arg13[%c0_160, %c0_161] : memref<8x128xf32, #tpu.memory_space<vmem>>, vector<8x128xf32>
      tpu.vector_store %arg13[%c0_160, %c0_161], %175 {strides = array<i32>} : memref<8x128xf32, #tpu.memory_space<vmem>>, vector<8x128xf32>,
    } else {
    }
    return
  }
  func.func @transform_0(%arg0: i32, %arg1: i32) -> (i32, i32) {
    %c0_i32 = arith.constant 0 : i32
    %c0_i32_0 = arith.constant 0 : i32
    return %c0_i32, %arg1 : i32, i32
  }
  func.func @transform_1(%arg0: i32, %arg1: i32) -> (i32, i32) {
    %c0_i32 = arith.constant 0 : i32
    %c0_i32_0 = arith.constant 0 : i32
    return %c0_i32, %arg1 : i32, i32
  }
  func.func @transform_2(%arg0: i32, %arg1: i32) -> (i32, i32, i32) {
    %c0_i32 = arith.constant 0 : i32
    %c0_i32_0 = arith.constant 0 : i32
    %c0_i32_1 = arith.constant 0 : i32
    return %arg1, %c0_i32, %c0_i32_0 : i32, i32, i32
  }
  func.func @transform_3(%arg0: i32, %arg1: i32) -> (i32, i32, i32) {
    %c0_i32 = arith.constant 0 : i32
    %c0_i32_0 = arith.constant 0 : i32
    %c0_i32_1 = arith.constant 0 : i32
    return %arg1, %c0_i32, %c0_i32_0 : i32, i32, i32
  }
  func.func @transform_4(%arg0: i32, %arg1: i32) -> (i32, i32, i32, i32, i32) {
    %c0_i32 = arith.constant 0 : i32
    %c0_i32_0 = arith.constant 0 : i32
    %c0_i32_1 = arith.constant 0 : i32
    %c0_i32_2 = arith.constant 0 : i32
    %c0_i32_3 = arith.constant 0 : i32
    return %arg1, %c0_i32, %c0_i32_0, %c0_i32_1, %c0_i32_2 : i32, i32, i32, i32, i32
  }
  func.func @transform_5(%arg0: i32, %arg1: i32) -> (i32, i32, i32, i32, i32) {
    %c0_i32 = arith.constant 0 : i32
    %c0_i32_0 = arith.constant 0 : i32
    %c0_i32_1 = arith.constant 0 : i32
    %c0_i32_2 = arith.constant 0 : i32
    %c0_i32_3 = arith.constant 0 : i32
    return %arg1, %c0_i32, %c0_i32_0, %c0_i32_1, %c0_i32_2 : i32, i32, i32, i32, i32
  }
  func.func @transform_6(%arg0: i32, %arg1: i32) -> (i32, i32, i32) {
    %c0_i32 = arith.constant 0 : i32
    %c0_i32_0 = arith.constant 0 : i32
    %c0_i32_1 = arith.constant 0 : i32
    return %arg1, %c0_i32, %c0_i32_0 : i32, i32, i32
  }
  func.func @transform_7(%arg0: i32, %arg1: i32) -> (i32, i32, i32) {
    %c0_i32 = arith.constant 0 : i32
    %c0_i32_0 = arith.constant 0 : i32
    %c0_i32_1 = arith.constant 0 : i32
    return %arg1, %c0_i32, %c0_i32_0 : i32, i32, i32
  }
  func.func @transform_8(%arg0: i32, %arg1: i32) -> (i32, i32, i32) {
    %c0_i32 = arith.constant 0 : i32
    %c0_i32_0 = arith.constant 0 : i32
    %c0_i32_1 = arith.constant 0 : i32
    return %arg1, %c0_i32, %c0_i32_0 : i32, i32, i32
  }
  func.func @transform_9(%arg0: i32, %arg1: i32) -> (i32, i32, i32) {
    %c0_i32 = arith.constant 0 : i32
    %c0_i32_0 = arith.constant 0 : i32
    %c0_i32_1 = arith.constant 0 : i32
    return %arg1, %c0_i32, %c0_i32_0 : i32, i32, i32
  }
  func.func @transform_10(%arg0: i32, %arg1: i32) -> (i32, i32) {
    %c0_i32 = arith.constant 0 : i32
    %c0_i32_0 = arith.constant 0 : i32
    return %arg0, %c0_i32 : i32, i32
  }
  func.func @transform_11(%arg0: i32, %arg1: i32) -> (i32, i32) {
    %c0_i32 = arith.constant 0 : i32
    %c0_i32_0 = arith.constant 0 : i32
    return %arg0, %c0_i32 : i32, i32
  }
}

</mosaic_0001>

<llo_original>
// kernel: tpu_custom_call.1
$region0: #{tpu_custom_call.1}
  #allocation0 [shape = 'u32[]', space=smem, size = 0x4, offset = 0x4, fixed_abs, tag = 'smem constant byte address 0x4 - core index']
  #allocation1 [shape = 'u32[72,128]{1,0:T(1,128)}', space=vmem, size = 0x9000, scoped, tag = 'internal scratch']
  %s0 = inlined_call_operand.hbm [shape: bf16[16,384], index: 0, kind: input, shape index: {}]
  %s1 = inlined_call_operand.hbm [shape: f32[1,384], index: 1, kind: input, shape index: {}]
  %s2 = inlined_call_operand.hbm [shape: bf16[3,128,128], index: 2, kind: input, shape index: {}]
  %s3 = inlined_call_operand.hbm [shape: f32[3,1,128], index: 3, kind: input, shape index: {}]
  %s4 = inlined_call_operand.hbm [shape: bf16[3,1,2,128,128], index: 4, kind: input, shape index: {}]
  %s5 = inlined_call_operand.hbm [shape: f32[3,1,2,1,128], index: 5, kind: input, shape index: {}]
  %s6 = inlined_call_operand.hbm [shape: bf16[3,128,128], index: 6, kind: input, shape index: {}]
  %s7 = inlined_call_operand.vmem [shape: f32[3,1,128], index: 7, kind: input, shape index: {}]
  %s8 = inlined_call_operand.hbm [shape: bf16[3,128,128], index: 8, kind: input, shape index: {}]
  %s9 = inlined_call_operand.hbm [shape: f32[3,1,128], index: 9, kind: input, shape index: {}]
  %s10 = inlined_call_operand.vmem [shape: bf16[8,16], index: 10, kind: input, shape index: {}]
  %s11 = inlined_call_operand.hbm [shape: f32[8,128], index: 11, kind: output, shape index: {}]
  %s12 = sld [smem:[#allocation0]]
  $region98: #{tpu_custom_call.1} parent=0
    _
  %s14 = ssub.s32 1, %s12
  %s15 = scalar_select 0, %s14, %s12
  $region1: #{tpu_custom_call.1} parent=0
    #allocation2 [shape = 'u8[12288]{0}', space=vmem, size = 0x3000, scoped, tag = 'input window, operand 0, single buffered']
    #allocation3 [shape = 's32[1]{0}', space=sflag, size = 0x4, scoped, tag = 'scoped memory for tpu_custom_call.1']
    #allocation4 [shape = 's32[1]{0}', space=sflag, size = 0x4, scoped, tag = 'scoped memory for tpu_custom_call.1']
    #allocation5 [shape = 'u8[1536]{0}', space=vmem, size = 0x800, scoped, tag = 'input window, operand 1, single buffered']
    #allocation6 [shape = 's32[1]{0}', space=sflag, size = 0x4, scoped, tag = 'scoped memory for tpu_custom_call.1']
    #allocation7 [shape = 'u8[98304]{0}', space=vmem, size = 0x18000, scoped, tag = 'input window, operand 2, single buffered']
    #allocation8 [shape = 'u8[1536]{0}', space=vmem, size = 0x800, scoped, tag = 'input window, operand 3, single buffered']
    #allocation9 [shape = 's32[1]{0}', space=sflag, size = 0x4, scoped, tag = 'scoped memory for tpu_custom_call.1']
    #allocation10 [shape = 'u8[196608]{0}', space=vmem, size = 0x30000, scoped, tag = 'input window, operand 4, single buffered']
    #allocation11 [shape = 'u8[3072]{0}', space=vmem, size = 0xc00, scoped, tag = 'input window, operand 5, single buffered']
    #allocation12 [shape = 's32[1]{0}', space=sflag, size = 0x4, scoped, tag = 'scoped memory for tpu_custom_call.1']
    #allocation13 [shape = 'u8[98304]{0}', space=vmem, size = 0x18000, scoped, tag = 'input window, operand 6, single buffered']
    #allocation14 [shape = 'u8[98304]{0}', space=vmem, size = 0x18000, scoped, tag = 'input window, operand 8, single buffered']
    #allocation15 [shape = 's32[1]{0}', space=sflag, size = 0x4, scoped, tag = 'scoped memory for tpu_custom_call.1']
    #allocation16 [shape = 'u8[1536]{0}', space=vmem, size = 0x800, scoped, tag = 'input window, operand 9, single buffered']
    #allocation17 [shape = 'u8[4096]{0}', space=vmem, size = 0x1000, scoped, tag = 'output window, operand 0, single buffered']
    %16 = vsyncpa [#allocation3], 0
    %17 = vsyncpa [#allocation6], 0
    %18 = vsyncpa [#allocation9], 0
    %19 = vsyncpa [#allocation12], 0
    %20 = vsyncpa [#allocation15], 0
    %21 = vsyncpa [#allocation4], 0
    // Predicated region
    $region2: #{tpu_custom_call.1} parent=1 // pred_check
      _
    $region3: #{tpu_custom_call.1} parent=1 // pred_check_branch
      %23 = sbr.rel (0) target = $region5
    $region4: #{tpu_custom_call.1} parent=1 // pred_region
      %25 = vsyncadd [#allocation3], 0
      %s26 = sshll.u32 %s0, 4
      %s27 = int_to_ptr.hbm [resolvable:$true] %s26
      %s28 = sshll.u32 [#allocation2], 4
      %s29 = int_to_ptr.vmem [resolvable:$true] %s28
      %34 = dma.hbm_to_vmem [thread:$0]  %s27, 384, %s29, [#allocation3], 192, 192, 12
    $region5: #{tpu_custom_call.1} parent=1 // pred_fallthru
      _
    // Predicated region
    $region6: #{tpu_custom_call.1} parent=1 // pred_check
      _
    $region7: #{tpu_custom_call.1} parent=1 // pred_check_branch
      %36 = sbr.rel (0) target = $region9
    $region8: #{tpu_custom_call.1} parent=1 // pred_region
      %38 = vsyncadd [#allocation6], 0
      %s40 = sshll.u32 %s1, 4
      %s41 = int_to_ptr.hbm [resolvable:$true] %s40
      %s42 = sshll.u32 [#allocation5], 4
      %s43 = int_to_ptr.vmem [resolvable:$true] %s42
      %45 = dma.hbm_to_vmem [thread:$0]  %s41, 48, %s43, [#allocation6]
    $region9: #{tpu_custom_call.1} parent=1 // pred_fallthru
      _
    // Predicated region
    $region10: #{tpu_custom_call.1} parent=1 // pred_check
      _
    $region11: #{tpu_custom_call.1} parent=1 // pred_check_branch
      %47 = sbr.rel (0) target = $region13
    $region12: #{tpu_custom_call.1} parent=1 // pred_region
      %49 = vsyncadd [#allocation6], 0
      %s50 = sshll.u32 %s2, 4
      %s51 = int_to_ptr.hbm [resolvable:$true] %s50
      %s52 = sshll.u32 [#allocation7], 4
      %s53 = int_to_ptr.vmem [resolvable:$true] %s52
      %58 = dma.hbm_to_vmem [thread:$0]  %s51, 3072, %s53, [#allocation6], 64, 64, 4
    $region13: #{tpu_custom_call.1} parent=1 // pred_fallthru
      _
    // Predicated region
    $region14: #{tpu_custom_call.1} parent=1 // pred_check
      _
    $region15: #{tpu_custom_call.1} parent=1 // pred_check_branch
      %60 = sbr.rel (0) target = $region17
    $region16: #{tpu_custom_call.1} parent=1 // pred_region
      %62 = vsyncadd [#allocation9], 0
      %s63 = sshll.u32 %s3, 4
      %s64 = int_to_ptr.hbm [resolvable:$true] %s63
      %s65 = sshll.u32 [#allocation8], 4
      %s66 = int_to_ptr.vmem [resolvable:$true] %s65
      %71 = dma.hbm_to_vmem [thread:$0]  %s64, 48, %s66, [#allocation9], 16, 16, 1
    $region17: #{tpu_custom_call.1} parent=1 // pred_fallthru
      _
    // Predicated region
    $region18: #{tpu_custom_call.1} parent=1 // pred_check
      _
    $region19: #{tpu_custom_call.1} parent=1 // pred_check_branch
      %73 = sbr.rel (0) target = $region21
    $region20: #{tpu_custom_call.1} parent=1 // pred_region
      %75 = vsyncadd [#allocation9], 0
      %s76 = sshll.u32 %s4, 4
      %s77 = int_to_ptr.hbm [resolvable:$true] %s76
      %s78 = sshll.u32 [#allocation10], 4
      %s79 = int_to_ptr.vmem [resolvable:$true] %s78
      %84 = dma.hbm_to_vmem [thread:$0]  %s77, 6144, %s79, [#allocation9], 64, 64, 4
    $region21: #{tpu_custom_call.1} parent=1 // pred_fallthru
      _
    // Predicated region
    $region22: #{tpu_custom_call.1} parent=1 // pred_check
      _
    $region23: #{tpu_custom_call.1} parent=1 // pred_check_branch
      %86 = sbr.rel (0) target = $region25
    $region24: #{tpu_custom_call.1} parent=1 // pred_region
      %88 = vsyncadd [#allocation12], 0
      %s89 = sshll.u32 %s5, 4
      %s90 = int_to_ptr.hbm [resolvable:$true] %s89
      %s91 = sshll.u32 [#allocation11], 4
      %s92 = int_to_ptr.vmem [resolvable:$true] %s91
      %97 = dma.hbm_to_vmem [thread:$0]  %s90, 96, %s92, [#allocation12], 16, 16, 1
    $region25: #{tpu_custom_call.1} parent=1 // pred_fallthru
      _
    // Predicated region
    $region26: #{tpu_custom_call.1} parent=1 // pred_check
      _
    $region27: #{tpu_custom_call.1} parent=1 // pred_check_branch
      %99 = sbr.rel (0) target = $region29
    $region28: #{tpu_custom_call.1} parent=1 // pred_region
      %101 = vsyncadd [#allocation12], 0
      %s102 = sshll.u32 %s6, 4
      %s103 = int_to_ptr.hbm [resolvable:$true] %s102
      %s104 = sshll.u32 [#allocation13], 4
      %s105 = int_to_ptr.vmem [resolvable:$true] %s104
      %110 = dma.hbm_to_vmem [thread:$0]  %s103, 3072, %s105, [#allocation12], 64, 64, 4
    $region29: #{tpu_custom_call.1} parent=1 // pred_fallthru
      _
    // Predicated region
    $region30: #{tpu_custom_call.1} parent=1 // pred_check
      _
    $region31: #{tpu_custom_call.1} parent=1 // pred_check_branch
      %112 = sbr.rel (0) target = $region33
    $region32: #{tpu_custom_call.1} parent=1 // pred_region
      _
    $region33: #{tpu_custom_call.1} parent=1 // pred_fallthru
      _
    // Predicated region
    $region34: #{tpu_custom_call.1} parent=1 // pred_check
      _
    $region35: #{tpu_custom_call.1} parent=1 // pred_check_branch
      %114 = sbr.rel (0) target = $region37
    $region36: #{tpu_custom_call.1} parent=1 // pred_region
      %116 = vsyncadd [#allocation15], 0
      %s117 = sshll.u32 %s8, 4
      %s118 = int_to_ptr.hbm [resolvable:$true] %s117
      %s119 = sshll.u32 [#allocation14], 4
      %s120 = int_to_ptr.vmem [resolvable:$true] %s119
      %125 = dma.hbm_to_vmem [thread:$0]  %s118, 3072, %s120, [#allocation15], 64, 64, 4
    $region37: #{tpu_custom_call.1} parent=1 // pred_fallthru
      _
    // Predicated region
    $region38: #{tpu_custom_call.1} parent=1 // pred_check
      _
    $region39: #{tpu_custom_call.1} parent=1 // pred_check_branch
      %127 = sbr.rel (0) target = $region41
    $region40: #{tpu_custom_call.1} parent=1 // pred_region
      %129 = vsyncadd [#allocation15], 0
      %s130 = sshll.u32 %s9, 4
      %s131 = int_to_ptr.hbm [resolvable:$true] %s130
      %s132 = sshll.u32 [#allocation16], 4
      %s133 = int_to_ptr.vmem [resolvable:$true] %s132
      %138 = dma.hbm_to_vmem [thread:$0]  %s131, 48, %s133, [#allocation15], 16, 16, 1
    $region41: #{tpu_custom_call.1} parent=1 // pred_fallthru
      _
    // Predicated region
    $region42: #{tpu_custom_call.1} parent=1 // pred_check
      _
    $region43: #{tpu_custom_call.1} parent=1 // pred_check_branch
      %140 = sbr.rel (0) target = $region45
    $region44: #{tpu_custom_call.1} parent=1 // pred_region
      _
    $region45: #{tpu_custom_call.1} parent=1 // pred_fallthru
      _
    // Predicated region
    $region46: #{tpu_custom_call.1} parent=1 // pred_check
      _
    $region47: #{tpu_custom_call.1} parent=1 // pred_check_branch
      %142 = sbr.rel (0) target = $region49
    $region48: #{tpu_custom_call.1} parent=1 // pred_region
      %144 = dma.done [#allocation3], 384
    $region49: #{tpu_custom_call.1} parent=1 // pred_fallthru
      _
    // Predicated region
    $region50: #{tpu_custom_call.1} parent=1 // pred_check
      _
    $region51: #{tpu_custom_call.1} parent=1 // pred_check_branch
      %146 = sbr.rel (0) target = $region53
    $region52: #{tpu_custom_call.1} parent=1 // pred_region
      %148 = dma.done [#allocation6], 48
    $region53: #{tpu_custom_call.1} parent=1 // pred_fallthru
      _
    // Predicated region
    $region54: #{tpu_custom_call.1} parent=1 // pred_check
      _
    $region55: #{tpu_custom_call.1} parent=1 // pred_check_branch
      %150 = sbr.rel (0) target = $region57
    $region56: #{tpu_custom_call.1} parent=1 // pred_region
      %152 = dma.done [#allocation6], 3072
    $region57: #{tpu_custom_call.1} parent=1 // pred_fallthru
      _
    // Predicated region
    $region58: #{tpu_custom_call.1} parent=1 // pred_check
      _
    $region59: #{tpu_custom_call.1} parent=1 // pred_check_branch
      %154 = sbr.rel (0) target = $region61
    $region60: #{tpu_custom_call.1} parent=1 // pred_region
      %156 = dma.done [#allocation9], 48
    $region61: #{tpu_custom_call.1} parent=1 // pred_fallthru
      _
    // Predicated region
    $region62: #{tpu_custom_call.1} parent=1 // pred_check
      _
    $region63: #{tpu_custom_call.1} parent=1 // pred_check_branch
      %158 = sbr.rel (0) target = $region65
    $region64: #{tpu_custom_call.1} parent=1 // pred_region
      %160 = dma.done [#allocation9], 6144
    $region65: #{tpu_custom_call.1} parent=1 // pred_fallthru
      _
    // Predicated region
    $region66: #{tpu_custom_call.1} parent=1 // pred_check
      _
    $region67: #{tpu_custom_call.1} parent=1 // pred_check_branch
      %162 = sbr.rel (0) target = $region69
    $region68: #{tpu_custom_call.1} parent=1 // pred_region
      %164 = dma.done [#allocation12], 96
    $region69: #{tpu_custom_call.1} parent=1 // pred_fallthru
      _
    // Predicated region
    $region70: #{tpu_custom_call.1} parent=1 // pred_check
      _
    $region71: #{tpu_custom_call.1} parent=1 // pred_check_branch
      %166 = sbr.rel (0) target = $region73
    $region72: #{tpu_custom_call.1} parent=1 // pred_region
      %168 = dma.done [#allocation12], 3072
    $region73: #{tpu_custom_call.1} parent=1 // pred_fallthru
      _
    // Predicated region
    $region74: #{tpu_custom_call.1} parent=1 // pred_check
      _
    $region75: #{tpu_custom_call.1} parent=1 // pred_check_branch
      %170 = sbr.rel (0) target = $region77
    $region76: #{tpu_custom_call.1} parent=1 // pred_region
      %172 = dma.done [#allocation15], 3072
    $region77: #{tpu_custom_call.1} parent=1 // pred_fallthru
      _
    // Predicated region
    $region78: #{tpu_custom_call.1} parent=1 // pred_check
      _
    $region79: #{tpu_custom_call.1} parent=1 // pred_check_branch
      %174 = sbr.rel (0) target = $region81
    $region80: #{tpu_custom_call.1} parent=1 // pred_region
      %176 = dma.done [#allocation15], 48
    $region81: #{tpu_custom_call.1} parent=1 // pred_fallthru
      _
    %p178 = scmp.eq.s32.totalorder 0, 0
    // Predicated region
    $region82: #{tpu_custom_call.1} parent=1 // pred_check
      %p179 = pneg %p178
    $region83: #{tpu_custom_call.1} parent=1 // pred_check_branch
      %181 = sbr.rel (%p179) target = $region85
    $region84: #{tpu_custom_call.1} parent=1 // pred_region
      %182 = vst [vmem:[#allocation17] sm:$0xff] 0.0
    $region85: #{tpu_custom_call.1} parent=1 // pred_fallthru
      _
    %v183 = vld [vmem:[%s10] sm:$0xf]
    %v184 = vld [vmem:[#allocation2] sm:$0xff]
    %v185 = vld [vmem:[#allocation2 + $0x8] sm:$0xf]
    %v186 = vld [vmem:[#allocation2 + $0xc] sm:$0xff]
    %v187 = vld [vmem:[#allocation2 + $0x14] sm:$0xf]
    %v188 = vld [vmem:[#allocation5] sm:$0x7]
    %v190 = vperm.slane %v188, 0
    %v191 = vperm.slane %v188, 1
    %v192 = vperm.slane %v188, 2
    %v200 = vunpack.c.l.b16 %v184
    %v201 = vunpack.c.h.b16 %v184
    %v202 = vunpack.c.l.b16 %v185
    %v203 = vunpack.c.l.b16 %v186
    %v204 = vunpack.c.h.b16 %v186
    %v205 = vunpack.c.l.b16 %v187
    %v206 = vpack.c.b16 %v203, %v200
    %v207 = vpack.c.b16 %v204, %v201
    %v208 = vpack.c.b16 %v205, %v202
    %vm212 = vcmask 130048
    %v214 = vsel %vm212, %v183, 0
    %216 = vmatpush.bf16.msra.mxu0 0
    %217 = vmatpush.bf16.msra.mxu0 0
    %218 = vmatpush.bf16.msra.mxu0 0
    %219 = vmatpush.bf16.msra.mxu0 0
    %220 = vmatpush.bf16.msra.mxu0 0
    %221 = vmatpush.bf16.msra.mxu0 0
    %222 = vmatpush.bf16.msra.mxu0 0
    %223 = vmatpush.bf16.msra.mxu0 %v206
    %224 = vmatmul.bf16.gmra.mxu0 %v214
    %v225 = vpop.f32.mrf.mxu0
    %v226 = vadd.f32 %v190, %v225
    %v227 = vpop.f32.mrf.mxu0
    %228 = vdwg.mxu0
    %229 = vmatpush.bf16.msra.mxu0 0
    %230 = vmatpush.bf16.msra.mxu0 0
    %231 = vmatpush.bf16.msra.mxu0 0
    %232 = vmatpush.bf16.msra.mxu0 0
    %233 = vmatpush.bf16.msra.mxu0 0
    %234 = vmatpush.bf16.msra.mxu0 0
    %235 = vmatpush.bf16.msra.mxu0 0
    %236 = vmatpush.bf16.msra.mxu0 %v207
    %237 = vmatmul.bf16.gmra.mxu0 %v214
    %v238 = vpop.f32.mrf.mxu0
    %v239 = vadd.f32 %v191, %v238
    %v240 = vpop.f32.mrf.mxu0
    %241 = vdwg.mxu0
    %242 = vmatpush.bf16.msra.mxu0 0
    %243 = vmatpush.bf16.msra.mxu0 0
    %244 = vmatpush.bf16.msra.mxu0 0
    %245 = vmatpush.bf16.msra.mxu0 0
    %246 = vmatpush.bf16.msra.mxu0 0
    %247 = vmatpush.bf16.msra.mxu0 0
    %248 = vmatpush.bf16.msra.mxu0 0
    %249 = vmatpush.bf16.msra.mxu0 %v208
    %250 = vmatmul.bf16.gmra.mxu0 %v214
    %v251 = vpop.f32.mrf.mxu0
    %v252 = vadd.f32 %v192, %v251
    %v253 = vpop.f32.mrf.mxu0
    %254 = vdwg.mxu0
    %v255 = vmax.f32 %v226, 0.0
    %v256 = vmax.f32 %v239, 0.0
    %v257 = vmax.f32 %v252, 0.0
    %v258 = vpack.c.bf16 %v255, %v255
    %v259 = vld [vmem:[#allocation7] sm:$0xf]
    %v260 = vld [vmem:[#allocation7 + $0x4] sm:$0xf]
    %v261 = vld [vmem:[#allocation7 + $0x8] sm:$0xf]
    %v262 = vld [vmem:[#allocation7 + $0xc] sm:$0xf]
    %v263 = vld [vmem:[#allocation7 + $0x10] sm:$0xf]
    %v264 = vld [vmem:[#allocation7 + $0x14] sm:$0xf]
    %v265 = vld [vmem:[#allocation7 + $0x18] sm:$0xf]
    %v266 = vld [vmem:[#allocation7 + $0x1c] sm:$0xf]
    %v267 = vld [vmem:[#allocation7 + $0x20] sm:$0xf]
    %v268 = vld [vmem:[#allocation7 + $0x24] sm:$0xf]
    %v269 = vld [vmem:[#allocation7 + $0x28] sm:$0xf]
    %v270 = vld [vmem:[#allocation7 + $0x2c] sm:$0xf]
    %v271 = vld [vmem:[#allocation7 + $0x30] sm:$0xf]
    %v272 = vld [vmem:[#allocation7 + $0x34] sm:$0xf]
    %v273 = vld [vmem:[#allocation7 + $0x38] sm:$0xf]
    %v274 = vld [vmem:[#allocation7 + $0x3c] sm:$0xf]
    %v275 = vld [vmem:[#allocation8] sm:$0x1]
    %v277 = vperm.slane %v275, 0
    %v295 = vunpack.c.l.b16 %v259
    %v296 = vunpack.c.l.b16 %v260
    %v297 = vunpack.c.l.b16 %v261
    %v298 = vunpack.c.l.b16 %v262
    %v299 = vunpack.c.l.b16 %v263
    %v300 = vunpack.c.l.b16 %v264
    %v301 = vunpack.c.l.b16 %v265
    %v302 = vunpack.c.l.b16 %v266
    %v303 = vunpack.c.l.b16 %v267
    %v304 = vunpack.c.l.b16 %v268
    %v305 = vunpack.c.l.b16 %v269
    %v306 = vunpack.c.l.b16 %v270
    %v307 = vunpack.c.l.b16 %v271
    %v308 = vunpack.c.l.b16 %v272
    %v309 = vunpack.c.l.b16 %v273
    %v310 = vunpack.c.l.b16 %v274
    %v311 = vpack.c.b16 %v296, %v295
    %v312 = vpack.c.b16 %v298, %v297
    %v313 = vpack.c.b16 %v300, %v299
    %v314 = vpack.c.b16 %v302, %v301
    %v315 = vpack.c.b16 %v304, %v303
    %v316 = vpack.c.b16 %v306, %v305
    %v317 = vpack.c.b16 %v308, %v307
    %v318 = vpack.c.b16 %v310, %v309
    %327 = vmatpush.bf16.msra.mxu0 %v318
    %328 = vmatpush.bf16.msra.mxu0 %v317
    %329 = vmatpush.bf16.msra.mxu0 %v316
    %330 = vmatpush.bf16.msra.mxu0 %v315
    %331 = vmatpush.bf16.msra.mxu0 %v314
    %332 = vmatpush.bf16.msra.mxu0 %v313
    %333 = vmatpush.bf16.msra.mxu0 %v312
    %334 = vmatpush.bf16.msra.mxu0 %v311
    %335 = vmatmul.bf16.gmra.mxu0 %v258
    %v336 = vpop.f32.mrf.mxu0
    %v337 = vadd.f32 %v277, %v336
    %v338 = vpop.f32.mrf.mxu0
    %339 = vdwg.mxu0
    %v340 = vpack.c.bf16 %v337, %v337
    %v341 = vld [vmem:[#allocation10] sm:$0xf]
    %v342 = vld [vmem:[#allocation10 + $0x4] sm:$0xf]
    %v343 = vld [vmem:[#allocation10 + $0x8] sm:$0xf]
    %v344 = vld [vmem:[#allocation10 + $0xc] sm:$0xf]
    %v345 = vld [vmem:[#allocation10 + $0x10] sm:$0xf]
    %v346 = vld [vmem:[#allocation10 + $0x14] sm:$0xf]
    %v347 = vld [vmem:[#allocation10 + $0x18] sm:$0xf]
    %v348 = vld [vmem:[#allocation10 + $0x1c] sm:$0xf]
    %v349 = vld [vmem:[#allocation10 + $0x20] sm:$0xf]
    %v350 = vld [vmem:[#allocation10 + $0x24] sm:$0xf]
    %v351 = vld [vmem:[#allocation10 + $0x28] sm:$0xf]
    %v352 = vld [vmem:[#allocation10 + $0x2c] sm:$0xf]
    %v353 = vld [vmem:[#allocation10 + $0x30] sm:$0xf]
    %v354 = vld [vmem:[#allocation10 + $0x34] sm:$0xf]
    %v355 = vld [vmem:[#allocation10 + $0x38] sm:$0xf]
    %v356 = vld [vmem:[#allocation10 + $0x3c] sm:$0xf]
    %v357 = vld [vmem:[#allocation11] sm:$0x1]
    %v359 = vperm.slane %v357, 0
    %v377 = vunpack.c.l.b16 %v341
    %v378 = vunpack.c.l.b16 %v342
    %v379 = vunpack.c.l.b16 %v343
    %v380 = vunpack.c.l.b16 %v344
    %v381 = vunpack.c.l.b16 %v345
    %v382 = vunpack.c.l.b16 %v346
    %v383 = vunpack.c.l.b16 %v347
    %v384 = vunpack.c.l.b16 %v348
    %v385 = vunpack.c.l.b16 %v349
    %v386 = vunpack.c.l.b16 %v350
    %v387 = vunpack.c.l.b16 %v351
    %v388 = vunpack.c.l.b16 %v352
    %v389 = vunpack.c.l.b16 %v353
    %v390 = vunpack.c.l.b16 %v354
    %v391 = vunpack.c.l.b16 %v355
    %v392 = vunpack.c.l.b16 %v356
    %v393 = vpack.c.b16 %v378, %v377
    %v394 = vpack.c.b16 %v380, %v379
    %v395 = vpack.c.b16 %v382, %v381
    %v396 = vpack.c.b16 %v384, %v383
    %v397 = vpack.c.b16 %v386, %v385
    %v398 = vpack.c.b16 %v388, %v387
    %v399 = vpack.c.b16 %v390, %v389
    %v400 = vpack.c.b16 %v392, %v391
    %409 = vmatpush.bf16.msra.mxu0 %v400
    %410 = vmatpush.bf16.msra.mxu0 %v399
    %411 = vmatpush.bf16.msra.mxu0 %v398
    %412 = vmatpush.bf16.msra.mxu0 %v397
    %413 = vmatpush.bf16.msra.mxu0 %v396
    %414 = vmatpush.bf16.msra.mxu0 %v395
    %415 = vmatpush.bf16.msra.mxu0 %v394
    %416 = vmatpush.bf16.msra.mxu0 %v393
    %417 = vmatmul.bf16.gmra.mxu0 %v340
    %v418 = vpop.f32.mrf.mxu0
    %v419 = vadd.f32 %v359, %v418
    %v420 = vpop.f32.mrf.mxu0
    %421 = vdwg.mxu0
    %v422 = vmax.f32 %v419, 0.0
    %v423 = vpack.c.bf16 %v422, %v422
    %s424 = scalar_lea.vmem [#allocation10], 64
    %v425 = vld [vmem:[%s424] sm:$0xf]
    %v426 = vld [vmem:[%s424 + $0x4] sm:$0xf]
    %v427 = vld [vmem:[%s424 + $0x8] sm:$0xf]
    %v428 = vld [vmem:[%s424 + $0xc] sm:$0xf]
    %v429 = vld [vmem:[%s424 + $0x10] sm:$0xf]
    %v430 = vld [vmem:[%s424 + $0x14] sm:$0xf]
    %v431 = vld [vmem:[%s424 + $0x18] sm:$0xf]
    %v432 = vld [vmem:[%s424 + $0x1c] sm:$0xf]
    %v433 = vld [vmem:[%s424 + $0x20] sm:$0xf]
    %v434 = vld [vmem:[%s424 + $0x24] sm:$0xf]
    %v435 = vld [vmem:[%s424 + $0x28] sm:$0xf]
    %v436 = vld [vmem:[%s424 + $0x2c] sm:$0xf]
    %v437 = vld [vmem:[%s424 + $0x30] sm:$0xf]
    %v438 = vld [vmem:[%s424 + $0x34] sm:$0xf]
    %v439 = vld [vmem:[%s424 + $0x38] sm:$0xf]
    %v440 = vld [vmem:[%s424 + $0x3c] sm:$0xf]
    %s441 = scalar_lea.vmem [#allocation11], 1
    %v442 = vld [vmem:[%s441] sm:$0x1]
    %v444 = vperm.slane %v442, 0
    %v462 = vunpack.c.l.b16 %v425
    %v463 = vunpack.c.l.b16 %v426
    %v464 = vunpack.c.l.b16 %v427
    %v465 = vunpack.c.l.b16 %v428
    %v466 = vunpack.c.l.b16 %v429
    %v467 = vunpack.c.l.b16 %v430
    %v468 = vunpack.c.l.b16 %v431
    %v469 = vunpack.c.l.b16 %v432
    %v470 = vunpack.c.l.b16 %v433
    %v471 = vunpack.c.l.b16 %v434
    %v472 = vunpack.c.l.b16 %v435
    %v473 = vunpack.c.l.b16 %v436
    %v474 = vunpack.c.l.b16 %v437
    %v475 = vunpack.c.l.b16 %v438
    %v476 = vunpack.c.l.b16 %v439
    %v477 = vunpack.c.l.b16 %v440
    %v478 = vpack.c.b16 %v463, %v462
    %v479 = vpack.c.b16 %v465, %v464
    %v480 = vpack.c.b16 %v467, %v466
    %v481 = vpack.c.b16 %v469, %v468
    %v482 = vpack.c.b16 %v471, %v470
    %v483 = vpack.c.b16 %v473, %v472
    %v484 = vpack.c.b16 %v475, %v474
    %v485 = vpack.c.b16 %v477, %v476
    %494 = vmatpush.bf16.msra.mxu0 %v485
    %495 = vmatpush.bf16.msra.mxu0 %v484
    %496 = vmatpush.bf16.msra.mxu0 %v483
    %497 = vmatpush.bf16.msra.mxu0 %v482
    %498 = vmatpush.bf16.msra.mxu0 %v481
    %499 = vmatpush.bf16.msra.mxu0 %v480
    %500 = vmatpush.bf16.msra.mxu0 %v479
    %501 = vmatpush.bf16.msra.mxu0 %v478
    %502 = vmatmul.bf16.gmra.mxu0 %v423
    %v503 = vpop.f32.mrf.mxu0
    %v504 = vadd.f32 %v444, %v503
    %v505 = vpop.f32.mrf.mxu0
    %506 = vdwg.mxu0
    %v507 = vpack.c.bf16 %v504, %v504
    %v508 = vld [vmem:[#allocation13] sm:$0xf]
    %v509 = vld [vmem:[#allocation13 + $0x4] sm:$0xf]
    %v510 = vld [vmem:[#allocation13 + $0x8] sm:$0xf]
    %v511 = vld [vmem:[#allocation13 + $0xc] sm:$0xf]
    %v512 = vld [vmem:[#allocation13 + $0x10] sm:$0xf]
    %v513 = vld [vmem:[#allocation13 + $0x14] sm:$0xf]
    %v514 = vld [vmem:[#allocation13 + $0x18] sm:$0xf]
    %v515 = vld [vmem:[#allocation13 + $0x1c] sm:$0xf]
    %v516 = vld [vmem:[#allocation13 + $0x20] sm:$0xf]
    %v517 = vld [vmem:[#allocation13 + $0x24] sm:$0xf]
    %v518 = vld [vmem:[#allocation13 + $0x28] sm:$0xf]
    %v519 = vld [vmem:[#allocation13 + $0x2c] sm:$0xf]
    %v520 = vld [vmem:[#allocation13 + $0x30] sm:$0xf]
    %v521 = vld [vmem:[#allocation13 + $0x34] sm:$0xf]
    %v522 = vld [vmem:[#allocation13 + $0x38] sm:$0xf]
    %v523 = vld [vmem:[#allocation13 + $0x3c] sm:$0xf]
    %v524 = vld [vmem:[%s7] sm:$0x1]
    %v526 = vperm.slane %v524, 0
    %v544 = vunpack.c.l.b16 %v508
    %v545 = vunpack.c.l.b16 %v509
    %v546 = vunpack.c.l.b16 %v510
    %v547 = vunpack.c.l.b16 %v511
    %v548 = vunpack.c.l.b16 %v512
    %v549 = vunpack.c.l.b16 %v513
    %v550 = vunpack.c.l.b16 %v514
    %v551 = vunpack.c.l.b16 %v515
    %v552 = vunpack.c.l.b16 %v516
    %v553 = vunpack.c.l.b16 %v517
    %v554 = vunpack.c.l.b16 %v518
    %v555 = vunpack.c.l.b16 %v519
    %v556 = vunpack.c.l.b16 %v520
    %v557 = vunpack.c.l.b16 %v521
    %v558 = vunpack.c.l.b16 %v522
    %v559 = vunpack.c.l.b16 %v523
    %v560 = vpack.c.b16 %v545, %v544
    %v561 = vpack.c.b16 %v547, %v546
    %v562 = vpack.c.b16 %v549, %v548
    %v563 = vpack.c.b16 %v551, %v550
    %v564 = vpack.c.b16 %v553, %v552
    %v565 = vpack.c.b16 %v555, %v554
    %v566 = vpack.c.b16 %v557, %v556
    %v567 = vpack.c.b16 %v559, %v558
    %576 = vmatpush.bf16.msra.mxu0 %v567
    %577 = vmatpush.bf16.msra.mxu0 %v566
    %578 = vmatpush.bf16.msra.mxu0 %v565
    %579 = vmatpush.bf16.msra.mxu0 %v564
    %580 = vmatpush.bf16.msra.mxu0 %v563
    %581 = vmatpush.bf16.msra.mxu0 %v562
    %582 = vmatpush.bf16.msra.mxu0 %v561
    %583 = vmatpush.bf16.msra.mxu0 %v560
    %584 = vmatmul.bf16.gmra.mxu0 %v507
    %v585 = vpop.f32.mrf.mxu0
    %v586 = vadd.f32 %v526, %v585
    %v587 = vpop.f32.mrf.mxu0
    %588 = vdwg.mxu0
    %v589 = vmax.f32 %v586, 0.0
    %v590 = vpack.c.bf16 %v589, %v589
    %v591 = vld [vmem:[#allocation14] sm:$0xf]
    %v592 = vld [vmem:[#allocation14 + $0x4] sm:$0xf]
    %v593 = vld [vmem:[#allocation14 + $0x8] sm:$0xf]
    %v594 = vld [vmem:[#allocation14 + $0xc] sm:$0xf]
    %v595 = vld [vmem:[#allocation14 + $0x10] sm:$0xf]
    %v596 = vld [vmem:[#allocation14 + $0x14] sm:$0xf]
    %v597 = vld [vmem:[#allocation14 + $0x18] sm:$0xf]
    %v598 = vld [vmem:[#allocation14 + $0x1c] sm:$0xf]
    %v599 = vld [vmem:[#allocation14 + $0x20] sm:$0xf]
    %v600 = vld [vmem:[#allocation14 + $0x24] sm:$0xf]
    %v601 = vld [vmem:[#allocation14 + $0x28] sm:$0xf]
    %v602 = vld [vmem:[#allocation14 + $0x2c] sm:$0xf]
    %v603 = vld [vmem:[#allocation14 + $0x30] sm:$0xf]
    %v604 = vld [vmem:[#allocation14 + $0x34] sm:$0xf]
    %v605 = vld [vmem:[#allocation14 + $0x38] sm:$0xf]
    %v606 = vld [vmem:[#allocation14 + $0x3c] sm:$0xf]
    %v607 = vld [vmem:[#allocation16] sm:$0x1]
    %v609 = vperm.slane %v607, 0
    %v627 = vunpack.c.l.b16 %v591
    %v628 = vunpack.c.l.b16 %v592
    %v629 = vunpack.c.l.b16 %v593
    %v630 = vunpack.c.l.b16 %v594
    %v631 = vunpack.c.l.b16 %v595
    %v632 = vunpack.c.l.b16 %v596
    %v633 = vunpack.c.l.b16 %v597
    %v634 = vunpack.c.l.b16 %v598
    %v635 = vunpack.c.l.b16 %v599
    %v636 = vunpack.c.l.b16 %v600
    %v637 = vunpack.c.l.b16 %v601
    %v638 = vunpack.c.l.b16 %v602
    %v639 = vunpack.c.l.b16 %v603
    %v640 = vunpack.c.l.b16 %v604
    %v641 = vunpack.c.l.b16 %v605
    %v642 = vunpack.c.l.b16 %v606
    %v643 = vpack.c.b16 %v628, %v627
    %v644 = vpack.c.b16 %v630, %v629
    %v645 = vpack.c.b16 %v632, %v631
    %v646 = vpack.c.b16 %v634, %v633
    %v647 = vpack.c.b16 %v636, %v635
    %v648 = vpack.c.b16 %v638, %v637
    %v649 = vpack.c.b16 %v640, %v639
    %v650 = vpack.c.b16 %v642, %v641
    %659 = vmatpush.bf16.msra.mxu0 %v650
    %660 = vmatpush.bf16.msra.mxu0 %v649
    %661 = vmatpush.bf16.msra.mxu0 %v648
    %662 = vmatpush.bf16.msra.mxu0 %v647
    %663 = vmatpush.bf16.msra.mxu0 %v646
    %664 = vmatpush.bf16.msra.mxu0 %v645
    %665 = vmatpush.bf16.msra.mxu0 %v644
    %666 = vmatpush.bf16.msra.mxu0 %v643
    %667 = vmatmul.bf16.gmra.mxu0 %v590
    %v668 = vpop.f32.mrf.mxu0
    %v669 = vadd.f32 %v609, %v668
    %v670 = vpop.f32.mrf.mxu0
    %671 = vdwg.mxu0
    %v672 = vld [vmem:[#allocation17] sm:$0xff]
    %v673 = vxor.u32 %v669, 2147483648
    %v674 = vmul.f32 %v673, 1.442695
    %v675 = vpow.pop %v674
    %v676 = vadd.f32 %v675, 1.0
    %v677 = vrcp.pop %v676
    %v678 = vmul.f32 %v676, %v677
    %v679 = vsub.f32 1.0, %v678
    %v680 = vmul.f32 %v677, %v679
    %v681 = vadd.f32 %v677, %v680
    %vm682 = vweird.f32 %v676
    %vm683 = vweird.f32 %v677
    %vm684 = vmor %vm682, %vm683
    %v685 = vsel %vm684, %v677, %v681
    %v686 = vand.u32 2147483647, %v676
    %vm687 = vcmp.eq.f32.partialorder %v686, 8.507059e+37
    %v688 = vand.u32 %v676, 2147483648
    %v689 = vor.u32 1.1754944e-38, %v688
    %v690 = vsel %vm687, %v689, %v685
    %v691 = vmul.f32 1.0, %v690
    %v692 = vadd.f32 %v672, %v691
    %693 = vst [vmem:[#allocation17] sm:$0xff] %v692
    %v694 = vpack.c.bf16 %v256, %v256
    %s695 = scalar_lea.vmem [#allocation7], 64
    %v696 = vld [vmem:[%s695] sm:$0xf]
    %v697 = vld [vmem:[%s695 + $0x4] sm:$0xf]
    %v698 = vld [vmem:[%s695 + $0x8] sm:$0xf]
    %v699 = vld [vmem:[%s695 + $0xc] sm:$0xf]
    %v700 = vld [vmem:[%s695 + $0x10] sm:$0xf]
    %v701 = vld [vmem:[%s695 + $0x14] sm:$0xf]
    %v702 = vld [vmem:[%s695 + $0x18] sm:$0xf]
    %v703 = vld [vmem:[%s695 + $0x1c] sm:$0xf]
    %v704 = vld [vmem:[%s695 + $0x20] sm:$0xf]
    %v705 = vld [vmem:[%s695 + $0x24] sm:$0xf]
    %v706 = vld [vmem:[%s695 + $0x28] sm:$0xf]
    %v707 = vld [vmem:[%s695 + $0x2c] sm:$0xf]
    %v708 = vld [vmem:[%s695 + $0x30] sm:$0xf]
    %v709 = vld [vmem:[%s695 + $0x34] sm:$0xf]
    %v710 = vld [vmem:[%s695 + $0x38] sm:$0xf]
    %v711 = vld [vmem:[%s695 + $0x3c] sm:$0xf]
    %s712 = scalar_lea.vmem [#allocation8], 1
    %v713 = vld [vmem:[%s712] sm:$0x1]
    %v715 = vperm.slane %v713, 0
    %v733 = vunpack.c.l.b16 %v696
    %v734 = vunpack.c.l.b16 %v697
    %v735 = vunpack.c.l.b16 %v698
    %v736 = vunpack.c.l.b16 %v699
    %v737 = vunpack.c.l.b16 %v700
    %v738 = vunpack.c.l.b16 %v701
    %v739 = vunpack.c.l.b16 %v702
    %v740 = vunpack.c.l.b16 %v703
    %v741 = vunpack.c.l.b16 %v704
    %v742 = vunpack.c.l.b16 %v705
    %v743 = vunpack.c.l.b16 %v706
    %v744 = vunpack.c.l.b16 %v707
    %v745 = vunpack.c.l.b16 %v708
    %v746 = vunpack.c.l.b16 %v709
    %v747 = vunpack.c.l.b16 %v710
    %v748 = vunpack.c.l.b16 %v711
    %v749 = vpack.c.b16 %v734, %v733
    %v750 = vpack.c.b16 %v736, %v735
    %v751 = vpack.c.b16 %v738, %v737
    %v752 = vpack.c.b16 %v740, %v739
    %v753 = vpack.c.b16 %v742, %v741
    %v754 = vpack.c.b16 %v744, %v743
    %v755 = vpack.c.b16 %v746, %v745
    %v756 = vpack.c.b16 %v748, %v747
    %765 = vmatpush.bf16.msra.mxu0 %v756
    %766 = vmatpush.bf16.msra.mxu0 %v755
    %767 = vmatpush.bf16.msra.mxu0 %v754
    %768 = vmatpush.bf16.msra.mxu0 %v753
    %769 = vmatpush.bf16.msra.mxu0 %v752
    %770 = vmatpush.bf16.msra.mxu0 %v751
    %771 = vmatpush.bf16.msra.mxu0 %v750
    %772 = vmatpush.bf16.msra.mxu0 %v749
    %773 = vmatmul.bf16.gmra.mxu0 %v694
    %v774 = vpop.f32.mrf.mxu0
    %v775 = vadd.f32 %v715, %v774
    %v776 = vpop.f32.mrf.mxu0
    %777 = vdwg.mxu0
    %v778 = vpack.c.bf16 %v775, %v775
    %s779 = scalar_lea.vmem [#allocation10], 128
    %v780 = vld [vmem:[%s779] sm:$0xf]
    %v781 = vld [vmem:[%s779 + $0x4] sm:$0xf]
    %v782 = vld [vmem:[%s779 + $0x8] sm:$0xf]
    %v783 = vld [vmem:[%s779 + $0xc] sm:$0xf]
    %v784 = vld [vmem:[%s779 + $0x10] sm:$0xf]
    %v785 = vld [vmem:[%s779 + $0x14] sm:$0xf]
    %v786 = vld [vmem:[%s779 + $0x18] sm:$0xf]
    %v787 = vld [vmem:[%s779 + $0x1c] sm:$0xf]
    %v788 = vld [vmem:[%s779 + $0x20] sm:$0xf]
    %v789 = vld [vmem:[%s779 + $0x24] sm:$0xf]
    %v790 = vld [vmem:[%s779 + $0x28] sm:$0xf]
    %v791 = vld [vmem:[%s779 + $0x2c] sm:$0xf]
    %v792 = vld [vmem:[%s779 + $0x30] sm:$0xf]
    %v793 = vld [vmem:[%s779 + $0x34] sm:$0xf]
    %v794 = vld [vmem:[%s779 + $0x38] sm:$0xf]
    %v795 = vld [vmem:[%s779 + $0x3c] sm:$0xf]
    %s796 = scalar_lea.vmem [#allocation11], 2
    %v797 = vld [vmem:[%s796] sm:$0x1]
    %v799 = vperm.slane %v797, 0
    %v817 = vunpack.c.l.b16 %v780
    %v818 = vunpack.c.l.b16 %v781
    %v819 = vunpack.c.l.b16 %v782
    %v820 = vunpack.c.l.b16 %v783
    %v821 = vunpack.c.l.b16 %v784
    %v822 = vunpack.c.l.b16 %v785
    %v823 = vunpack.c.l.b16 %v786
    %v824 = vunpack.c.l.b16 %v787
    %v825 = vunpack.c.l.b16 %v788
    %v826 = vunpack.c.l.b16 %v789
    %v827 = vunpack.c.l.b16 %v790
    %v828 = vunpack.c.l.b16 %v791
    %v829 = vunpack.c.l.b16 %v792
    %v830 = vunpack.c.l.b16 %v793
    %v831 = vunpack.c.l.b16 %v794
    %v832 = vunpack.c.l.b16 %v795
    %v833 = vpack.c.b16 %v818, %v817
    %v834 = vpack.c.b16 %v820, %v819
    %v835 = vpack.c.b16 %v822, %v821
    %v836 = vpack.c.b16 %v824, %v823
    %v837 = vpack.c.b16 %v826, %v825
    %v838 = vpack.c.b16 %v828, %v827
    %v839 = vpack.c.b16 %v830, %v829
    %v840 = vpack.c.b16 %v832, %v831
    %849 = vmatpush.bf16.msra.mxu0 %v840
    %850 = vmatpush.bf16.msra.mxu0 %v839
    %851 = vmatpush.bf16.msra.mxu0 %v838
    %852 = vmatpush.bf16.msra.mxu0 %v837
    %853 = vmatpush.bf16.msra.mxu0 %v836
    %854 = vmatpush.bf16.msra.mxu0 %v835
    %855 = vmatpush.bf16.msra.mxu0 %v834
    %856 = vmatpush.bf16.msra.mxu0 %v833
    %857 = vmatmul.bf16.gmra.mxu0 %v778
    %v858 = vpop.f32.mrf.mxu0
    %v859 = vadd.f32 %v799, %v858
    %v860 = vpop.f32.mrf.mxu0
    %861 = vdwg.mxu0
    %v862 = vmax.f32 %v859, 0.0
    %v863 = vpack.c.bf16 %v862, %v862
    %s864 = scalar_lea.vmem [#allocation10], 192
    %v865 = vld [vmem:[%s864] sm:$0xf]
    %v866 = vld [vmem:[%s864 + $0x4] sm:$0xf]
    %v867 = vld [vmem:[%s864 + $0x8] sm:$0xf]
    %v868 = vld [vmem:[%s864 + $0xc] sm:$0xf]
    %v869 = vld [vmem:[%s864 + $0x10] sm:$0xf]
    %v870 = vld [vmem:[%s864 + $0x14] sm:$0xf]
    %v871 = vld [vmem:[%s864 + $0x18] sm:$0xf]
    %v872 = vld [vmem:[%s864 + $0x1c] sm:$0xf]
    %v873 = vld [vmem:[%s864 + $0x20] sm:$0xf]
    %v874 = vld [vmem:[%s864 + $0x24] sm:$0xf]
    %v875 = vld [vmem:[%s864 + $0x28] sm:$0xf]
    %v876 = vld [vmem:[%s864 + $0x2c] sm:$0xf]
    %v877 = vld [vmem:[%s864 + $0x30] sm:$0xf]
    %v878 = vld [vmem:[%s864 + $0x34] sm:$0xf]
    %v879 = vld [vmem:[%s864 + $0x38] sm:$0xf]
    %v880 = vld [vmem:[%s864 + $0x3c] sm:$0xf]
    %s881 = scalar_lea.vmem [#allocation11], 3
    %v882 = vld [vmem:[%s881] sm:$0x1]
    %v884 = vperm.slane %v882, 0
    %v902 = vunpack.c.l.b16 %v865
    %v903 = vunpack.c.l.b16 %v866
    %v904 = vunpack.c.l.b16 %v867
    %v905 = vunpack.c.l.b16 %v868
    %v906 = vunpack.c.l.b16 %v869
    %v907 = vunpack.c.l.b16 %v870
    %v908 = vunpack.c.l.b16 %v871
    %v909 = vunpack.c.l.b16 %v872
    %v910 = vunpack.c.l.b16 %v873
    %v911 = vunpack.c.l.b16 %v874
    %v912 = vunpack.c.l.b16 %v875
    %v913 = vunpack.c.l.b16 %v876
    %v914 = vunpack.c.l.b16 %v877
    %v915 = vunpack.c.l.b16 %v878
    %v916 = vunpack.c.l.b16 %v879
    %v917 = vunpack.c.l.b16 %v880
    %v918 = vpack.c.b16 %v903, %v902
    %v919 = vpack.c.b16 %v905, %v904
    %v920 = vpack.c.b16 %v907, %v906
    %v921 = vpack.c.b16 %v909, %v908
    %v922 = vpack.c.b16 %v911, %v910
    %v923 = vpack.c.b16 %v913, %v912
    %v924 = vpack.c.b16 %v915, %v914
    %v925 = vpack.c.b16 %v917, %v916
    %934 = vmatpush.bf16.msra.mxu0 %v925
    %935 = vmatpush.bf16.msra.mxu0 %v924
    %936 = vmatpush.bf16.msra.mxu0 %v923
    %937 = vmatpush.bf16.msra.mxu0 %v922
    %938 = vmatpush.bf16.msra.mxu0 %v921
    %939 = vmatpush.bf16.msra.mxu0 %v920
    %940 = vmatpush.bf16.msra.mxu0 %v919
    %941 = vmatpush.bf16.msra.mxu0 %v918
    %942 = vmatmul.bf16.gmra.mxu0 %v863
    %v943 = vpop.f32.mrf.mxu0
    %v944 = vadd.f32 %v884, %v943
    %v945 = vpop.f32.mrf.mxu0
    %946 = vdwg.mxu0
    %v947 = vpack.c.bf16 %v944, %v944
    %s948 = scalar_lea.vmem [#allocation13], 64
    %v949 = vld [vmem:[%s948] sm:$0xf]
    %v950 = vld [vmem:[%s948 + $0x4] sm:$0xf]
    %v951 = vld [vmem:[%s948 + $0x8] sm:$0xf]
    %v952 = vld [vmem:[%s948 + $0xc] sm:$0xf]
    %v953 = vld [vmem:[%s948 + $0x10] sm:$0xf]
    %v954 = vld [vmem:[%s948 + $0x14] sm:$0xf]
    %v955 = vld [vmem:[%s948 + $0x18] sm:$0xf]
    %v956 = vld [vmem:[%s948 + $0x1c] sm:$0xf]
    %v957 = vld [vmem:[%s948 + $0x20] sm:$0xf]
    %v958 = vld [vmem:[%s948 + $0x24] sm:$0xf]
    %v959 = vld [vmem:[%s948 + $0x28] sm:$0xf]
    %v960 = vld [vmem:[%s948 + $0x2c] sm:$0xf]
    %v961 = vld [vmem:[%s948 + $0x30] sm:$0xf]
    %v962 = vld [vmem:[%s948 + $0x34] sm:$0xf]
    %v963 = vld [vmem:[%s948 + $0x38] sm:$0xf]
    %v964 = vld [vmem:[%s948 + $0x3c] sm:$0xf]
    %s965 = scalar_lea.vmem %s7, 1
    %v966 = vld [vmem:[%s965] sm:$0x1]
    %v968 = vperm.slane %v966, 0
    %v986 = vunpack.c.l.b16 %v949
    %v987 = vunpack.c.l.b16 %v950
    %v988 = vunpack.c.l.b16 %v951
    %v989 = vunpack.c.l.b16 %v952
    %v990 = vunpack.c.l.b16 %v953
    %v991 = vunpack.c.l.b16 %v954
    %v992 = vunpack.c.l.b16 %v955
    %v993 = vunpack.c.l.b16 %v956
    %v994 = vunpack.c.l.b16 %v957
    %v995 = vunpack.c.l.b16 %v958
    %v996 = vunpack.c.l.b16 %v959
    %v997 = vunpack.c.l.b16 %v960
    %v998 = vunpack.c.l.b16 %v961
    %v999 = vunpack.c.l.b16 %v962
    %v1000 = vunpack.c.l.b16 %v963
    %v1001 = vunpack.c.l.b16 %v964
    %v1002 = vpack.c.b16 %v987, %v986
    %v1003 = vpack.c.b16 %v989, %v988
    %v1004 = vpack.c.b16 %v991, %v990
    %v1005 = vpack.c.b16 %v993, %v992
    %v1006 = vpack.c.b16 %v995, %v994
    %v1007 = vpack.c.b16 %v997, %v996
    %v1008 = vpack.c.b16 %v999, %v998
    %v1009 = vpack.c.b16 %v1001, %v1000
    %1018 = vmatpush.bf16.msra.mxu0 %v1009
    %1019 = vmatpush.bf16.msra.mxu0 %v1008
    %1020 = vmatpush.bf16.msra.mxu0 %v1007
    %1021 = vmatpush.bf16.msra.mxu0 %v1006
    %1022 = vmatpush.bf16.msra.mxu0 %v1005
    %1023 = vmatpush.bf16.msra.mxu0 %v1004
    %1024 = vmatpush.bf16.msra.mxu0 %v1003
    %1025 = vmatpush.bf16.msra.mxu0 %v1002
    %1026 = vmatmul.bf16.gmra.mxu0 %v947
    %v1027 = vpop.f32.mrf.mxu0
    %v1028 = vadd.f32 %v968, %v1027
    %v1029 = vpop.f32.mrf.mxu0
    %1030 = vdwg.mxu0
    %v1031 = vmax.f32 %v1028, 0.0
    %v1032 = vpack.c.bf16 %v1031, %v1031
    %s1033 = scalar_lea.vmem [#allocation14], 64
    %v1034 = vld [vmem:[%s1033] sm:$0xf]
    %v1035 = vld [vmem:[%s1033 + $0x4] sm:$0xf]
    %v1036 = vld [vmem:[%s1033 + $0x8] sm:$0xf]
    %v1037 = vld [vmem:[%s1033 + $0xc] sm:$0xf]
    %v1038 = vld [vmem:[%s1033 + $0x10] sm:$0xf]
    %v1039 = vld [vmem:[%s1033 + $0x14] sm:$0xf]
    %v1040 = vld [vmem:[%s1033 + $0x18] sm:$0xf]
    %v1041 = vld [vmem:[%s1033 + $0x1c] sm:$0xf]
    %v1042 = vld [vmem:[%s1033 + $0x20] sm:$0xf]
    %v1043 = vld [vmem:[%s1033 + $0x24] sm:$0xf]
    %v1044 = vld [vmem:[%s1033 + $0x28] sm:$0xf]
    %v1045 = vld [vmem:[%s1033 + $0x2c] sm:$0xf]
    %v1046 = vld [vmem:[%s1033 + $0x30] sm:$0xf]
    %v1047 = vld [vmem:[%s1033 + $0x34] sm:$0xf]
    %v1048 = vld [vmem:[%s1033 + $0x38] sm:$0xf]
    %v1049 = vld [vmem:[%s1033 + $0x3c] sm:$0xf]
    %s1050 = scalar_lea.vmem [#allocation16], 1
    %v1051 = vld [vmem:[%s1050] sm:$0x1]
    %v1053 = vperm.slane %v1051, 0
    %v1071 = vunpack.c.l.b16 %v1034
    %v1072 = vunpack.c.l.b16 %v1035
    %v1073 = vunpack.c.l.b16 %v1036
    %v1074 = vunpack.c.l.b16 %v1037
    %v1075 = vunpack.c.l.b16 %v1038
    %v1076 = vunpack.c.l.b16 %v1039
    %v1077 = vunpack.c.l.b16 %v1040
    %v1078 = vunpack.c.l.b16 %v1041
    %v1079 = vunpack.c.l.b16 %v1042
    %v1080 = vunpack.c.l.b16 %v1043
    %v1081 = vunpack.c.l.b16 %v1044
    %v1082 = vunpack.c.l.b16 %v1045
    %v1083 = vunpack.c.l.b16 %v1046
    %v1084 = vunpack.c.l.b16 %v1047
    %v1085 = vunpack.c.l.b16 %v1048
    %v1086 = vunpack.c.l.b16 %v1049
    %v1087 = vpack.c.b16 %v1072, %v1071
    %v1088 = vpack.c.b16 %v1074, %v1073
    %v1089 = vpack.c.b16 %v1076, %v1075
    %v1090 = vpack.c.b16 %v1078, %v1077
    %v1091 = vpack.c.b16 %v1080, %v1079
    %v1092 = vpack.c.b16 %v1082, %v1081
    %v1093 = vpack.c.b16 %v1084, %v1083
    %v1094 = vpack.c.b16 %v1086, %v1085
    %1103 = vmatpush.bf16.msra.mxu0 %v1094
    %1104 = vmatpush.bf16.msra.mxu0 %v1093
    %1105 = vmatpush.bf16.msra.mxu0 %v1092
    %1106 = vmatpush.bf16.msra.mxu0 %v1091
    %1107 = vmatpush.bf16.msra.mxu0 %v1090
    %1108 = vmatpush.bf16.msra.mxu0 %v1089
    %1109 = vmatpush.bf16.msra.mxu0 %v1088
    %1110 = vmatpush.bf16.msra.mxu0 %v1087
    %1111 = vmatmul.bf16.gmra.mxu0 %v1032
    %v1112 = vpop.f32.mrf.mxu0
    %v1113 = vadd.f32 %v1053, %v1112
    %v1114 = vpop.f32.mrf.mxu0
    %1115 = vdwg.mxu0
    %v1116 = vld [vmem:[#allocation17] sm:$0xff]
    %v1117 = vxor.u32 %v1113, 2147483648
    %v1118 = vmul.f32 %v1117, 1.442695
    %v1119 = vpow.pop %v1118
    %v1120 = vadd.f32 %v1119, 1.0
    %v1121 = vrcp.pop %v1120
    %v1122 = vmul.f32 %v1120, %v1121
    %v1123 = vsub.f32 1.0, %v1122
    %v1124 = vmul.f32 %v1121, %v1123
    %v1125 = vadd.f32 %v1121, %v1124
    %vm1126 = vweird.f32 %v1120
    %vm1127 = vweird.f32 %v1121
    %vm1128 = vmor %vm1126, %vm1127
    %v1129 = vsel %vm1128, %v1121, %v1125
    %v1130 = vand.u32 2147483647, %v1120
    %vm1131 = vcmp.eq.f32.partialorder %v1130, 8.507059e+37
    %v1132 = vand.u32 %v1120, 2147483648
    %v1133 = vor.u32 1.1754944e-38, %v1132
    %v1134 = vsel %vm1131, %v1133, %v1129
    %v1135 = vmul.f32 1.0, %v1134
    %v1136 = vadd.f32 %v1116, %v1135
    %1137 = vst [vmem:[#allocation17] sm:$0xff] %v1136
    %v1138 = vpack.c.bf16 %v257, %v257
    %s1139 = scalar_lea.vmem [#allocation7], 128
    %v1140 = vld [vmem:[%s1139] sm:$0xf]
    %v1141 = vld [vmem:[%s1139 + $0x4] sm:$0xf]
    %v1142 = vld [vmem:[%s1139 + $0x8] sm:$0xf]
    %v1143 = vld [vmem:[%s1139 + $0xc] sm:$0xf]
    %v1144 = vld [vmem:[%s1139 + $0x10] sm:$0xf]
    %v1145 = vld [vmem:[%s1139 + $0x14] sm:$0xf]
    %v1146 = vld [vmem:[%s1139 + $0x18] sm:$0xf]
    %v1147 = vld [vmem:[%s1139 + $0x1c] sm:$0xf]
    %v1148 = vld [vmem:[%s1139 + $0x20] sm:$0xf]
    %v1149 = vld [vmem:[%s1139 + $0x24] sm:$0xf]
    %v1150 = vld [vmem:[%s1139 + $0x28] sm:$0xf]
    %v1151 = vld [vmem:[%s1139 + $0x2c] sm:$0xf]
    %v1152 = vld [vmem:[%s1139 + $0x30] sm:$0xf]
    %v1153 = vld [vmem:[%s1139 + $0x34] sm:$0xf]
    %v1154 = vld [vmem:[%s1139 + $0x38] sm:$0xf]
    %v1155 = vld [vmem:[%s1139 + $0x3c] sm:$0xf]
    %s1156 = scalar_lea.vmem [#allocation8], 2
    %v1157 = vld [vmem:[%s1156] sm:$0x1]
    %v1159 = vperm.slane %v1157, 0
    %v1177 = vunpack.c.l.b16 %v1140
    %v1178 = vunpack.c.l.b16 %v1141
    %v1179 = vunpack.c.l.b16 %v1142
    %v1180 = vunpack.c.l.b16 %v1143
    %v1181 = vunpack.c.l.b16 %v1144
    %v1182 = vunpack.c.l.b16 %v1145
    %v1183 = vunpack.c.l.b16 %v1146
    %v1184 = vunpack.c.l.b16 %v1147
    %v1185 = vunpack.c.l.b16 %v1148
    %v1186 = vunpack.c.l.b16 %v1149
    %v1187 = vunpack.c.l.b16 %v1150
    %v1188 = vunpack.c.l.b16 %v1151
    %v1189 = vunpack.c.l.b16 %v1152
    %v1190 = vunpack.c.l.b16 %v1153
    %v1191 = vunpack.c.l.b16 %v1154
    %v1192 = vunpack.c.l.b16 %v1155
    %v1193 = vpack.c.b16 %v1178, %v1177
    %v1194 = vpack.c.b16 %v1180, %v1179
    %v1195 = vpack.c.b16 %v1182, %v1181
    %v1196 = vpack.c.b16 %v1184, %v1183
    %v1197 = vpack.c.b16 %v1186, %v1185
    %v1198 = vpack.c.b16 %v1188, %v1187
    %v1199 = vpack.c.b16 %v1190, %v1189
    %v1200 = vpack.c.b16 %v1192, %v1191
    %1209 = vmatpush.bf16.msra.mxu0 %v1200
    %1210 = vmatpush.bf16.msra.mxu0 %v1199
    %1211 = vmatpush.bf16.msra.mxu0 %v1198
    %1212 = vmatpush.bf16.msra.mxu0 %v1197
    %1213 = vmatpush.bf16.msra.mxu0 %v1196
    %1214 = vmatpush.bf16.msra.mxu0 %v1195
    %1215 = vmatpush.bf16.msra.mxu0 %v1194
    %1216 = vmatpush.bf16.msra.mxu0 %v1193
    %1217 = vmatmul.bf16.gmra.mxu0 %v1138
    %v1218 = vpop.f32.mrf.mxu0
    %v1219 = vadd.f32 %v1159, %v1218
    %v1220 = vpop.f32.mrf.mxu0
    %1221 = vdwg.mxu0
    %v1222 = vpack.c.bf16 %v1219, %v1219
    %s1223 = scalar_lea.vmem [#allocation10], 256
    %v1224 = vld [vmem:[%s1223] sm:$0xf]
    %v1225 = vld [vmem:[%s1223 + $0x4] sm:$0xf]
    %v1226 = vld [vmem:[%s1223 + $0x8] sm:$0xf]
    %v1227 = vld [vmem:[%s1223 + $0xc] sm:$0xf]
    %v1228 = vld [vmem:[%s1223 + $0x10] sm:$0xf]
    %v1229 = vld [vmem:[%s1223 + $0x14] sm:$0xf]
    %v1230 = vld [vmem:[%s1223 + $0x18] sm:$0xf]
    %v1231 = vld [vmem:[%s1223 + $0x1c] sm:$0xf]
    %v1232 = vld [vmem:[%s1223 + $0x20] sm:$0xf]
    %v1233 = vld [vmem:[%s1223 + $0x24] sm:$0xf]
    %v1234 = vld [vmem:[%s1223 + $0x28] sm:$0xf]
    %v1235 = vld [vmem:[%s1223 + $0x2c] sm:$0xf]
    %v1236 = vld [vmem:[%s1223 + $0x30] sm:$0xf]
    %v1237 = vld [vmem:[%s1223 + $0x34] sm:$0xf]
    %v1238 = vld [vmem:[%s1223 + $0x38] sm:$0xf]
    %v1239 = vld [vmem:[%s1223 + $0x3c] sm:$0xf]
    %s1240 = scalar_lea.vmem [#allocation11], 4
    %v1241 = vld [vmem:[%s1240] sm:$0x1]
    %v1243 = vperm.slane %v1241, 0
    %v1261 = vunpack.c.l.b16 %v1224
    %v1262 = vunpack.c.l.b16 %v1225
    %v1263 = vunpack.c.l.b16 %v1226
    %v1264 = vunpack.c.l.b16 %v1227
    %v1265 = vunpack.c.l.b16 %v1228
    %v1266 = vunpack.c.l.b16 %v1229
    %v1267 = vunpack.c.l.b16 %v1230
    %v1268 = vunpack.c.l.b16 %v1231
    %v1269 = vunpack.c.l.b16 %v1232
    %v1270 = vunpack.c.l.b16 %v1233
    %v1271 = vunpack.c.l.b16 %v1234
    %v1272 = vunpack.c.l.b16 %v1235
    %v1273 = vunpack.c.l.b16 %v1236
    %v1274 = vunpack.c.l.b16 %v1237
    %v1275 = vunpack.c.l.b16 %v1238
    %v1276 = vunpack.c.l.b16 %v1239
    %v1277 = vpack.c.b16 %v1262, %v1261
    %v1278 = vpack.c.b16 %v1264, %v1263
    %v1279 = vpack.c.b16 %v1266, %v1265
    %v1280 = vpack.c.b16 %v1268, %v1267
    %v1281 = vpack.c.b16 %v1270, %v1269
    %v1282 = vpack.c.b16 %v1272, %v1271
    %v1283 = vpack.c.b16 %v1274, %v1273
    %v1284 = vpack.c.b16 %v1276, %v1275
    %1293 = vmatpush.bf16.msra.mxu0 %v1284
    %1294 = vmatpush.bf16.msra.mxu0 %v1283
    %1295 = vmatpush.bf16.msra.mxu0 %v1282
    %1296 = vmatpush.bf16.msra.mxu0 %v1281
    %1297 = vmatpush.bf16.msra.mxu0 %v1280
    %1298 = vmatpush.bf16.msra.mxu0 %v1279
    %1299 = vmatpush.bf16.msra.mxu0 %v1278
    %1300 = vmatpush.bf16.msra.mxu0 %v1277
    %1301 = vmatmul.bf16.gmra.mxu0 %v1222
    %v1302 = vpop.f32.mrf.mxu0
    %v1303 = vadd.f32 %v1243, %v1302
    %v1304 = vpop.f32.mrf.mxu0
    %1305 = vdwg.mxu0
    %v1306 = vmax.f32 %v1303, 0.0
    %v1307 = vpack.c.bf16 %v1306, %v1306
    %s1308 = scalar_lea.vmem [#allocation10], 320
    %v1309 = vld [vmem:[%s1308] sm:$0xf]
    %v1310 = vld [vmem:[%s1308 + $0x4] sm:$0xf]
    %v1311 = vld [vmem:[%s1308 + $0x8] sm:$0xf]
    %v1312 = vld [vmem:[%s1308 + $0xc] sm:$0xf]
    %v1313 = vld [vmem:[%s1308 + $0x10] sm:$0xf]
    %v1314 = vld [vmem:[%s1308 + $0x14] sm:$0xf]
    %v1315 = vld [vmem:[%s1308 + $0x18] sm:$0xf]
    %v1316 = vld [vmem:[%s1308 + $0x1c] sm:$0xf]
    %v1317 = vld [vmem:[%s1308 + $0x20] sm:$0xf]
    %v1318 = vld [vmem:[%s1308 + $0x24] sm:$0xf]
    %v1319 = vld [vmem:[%s1308 + $0x28] sm:$0xf]
    %v1320 = vld [vmem:[%s1308 + $0x2c] sm:$0xf]
    %v1321 = vld [vmem:[%s1308 + $0x30] sm:$0xf]
    %v1322 = vld [vmem:[%s1308 + $0x34] sm:$0xf]
    %v1323 = vld [vmem:[%s1308 + $0x38] sm:$0xf]
    %v1324 = vld [vmem:[%s1308 + $0x3c] sm:$0xf]
    %s1325 = scalar_lea.vmem [#allocation11], 5
    %v1326 = vld [vmem:[%s1325] sm:$0x1]
    %v1328 = vperm.slane %v1326, 0
    %v1346 = vunpack.c.l.b16 %v1309
    %v1347 = vunpack.c.l.b16 %v1310
    %v1348 = vunpack.c.l.b16 %v1311
    %v1349 = vunpack.c.l.b16 %v1312
    %v1350 = vunpack.c.l.b16 %v1313
    %v1351 = vunpack.c.l.b16 %v1314
    %v1352 = vunpack.c.l.b16 %v1315
    %v1353 = vunpack.c.l.b16 %v1316
    %v1354 = vunpack.c.l.b16 %v1317
    %v1355 = vunpack.c.l.b16 %v1318
    %v1356 = vunpack.c.l.b16 %v1319
    %v1357 = vunpack.c.l.b16 %v1320
    %v1358 = vunpack.c.l.b16 %v1321
    %v1359 = vunpack.c.l.b16 %v1322
    %v1360 = vunpack.c.l.b16 %v1323
    %v1361 = vunpack.c.l.b16 %v1324
    %v1362 = vpack.c.b16 %v1347, %v1346
    %v1363 = vpack.c.b16 %v1349, %v1348
    %v1364 = vpack.c.b16 %v1351, %v1350
    %v1365 = vpack.c.b16 %v1353, %v1352
    %v1366 = vpack.c.b16 %v1355, %v1354
    %v1367 = vpack.c.b16 %v1357, %v1356
    %v1368 = vpack.c.b16 %v1359, %v1358
    %v1369 = vpack.c.b16 %v1361, %v1360
    %1378 = vmatpush.bf16.msra.mxu0 %v1369
    %1379 = vmatpush.bf16.msra.mxu0 %v1368
    %1380 = vmatpush.bf16.msra.mxu0 %v1367
    %1381 = vmatpush.bf16.msra.mxu0 %v1366
    %1382 = vmatpush.bf16.msra.mxu0 %v1365
    %1383 = vmatpush.bf16.msra.mxu0 %v1364
    %1384 = vmatpush.bf16.msra.mxu0 %v1363
    %1385 = vmatpush.bf16.msra.mxu0 %v1362
    %1386 = vmatmul.bf16.gmra.mxu0 %v1307
    %v1387 = vpop.f32.mrf.mxu0
    %v1388 = vadd.f32 %v1328, %v1387
    %v1389 = vpop.f32.mrf.mxu0
    %1390 = vdwg.mxu0
    %v1391 = vpack.c.bf16 %v1388, %v1388
    %s1392 = scalar_lea.vmem [#allocation13], 128
    %v1393 = vld [vmem:[%s1392] sm:$0xf]
    %v1394 = vld [vmem:[%s1392 + $0x4] sm:$0xf]
    %v1395 = vld [vmem:[%s1392 + $0x8] sm:$0xf]
    %v1396 = vld [vmem:[%s1392 + $0xc] sm:$0xf]
    %v1397 = vld [vmem:[%s1392 + $0x10] sm:$0xf]
    %v1398 = vld [vmem:[%s1392 + $0x14] sm:$0xf]
    %v1399 = vld [vmem:[%s1392 + $0x18] sm:$0xf]
    %v1400 = vld [vmem:[%s1392 + $0x1c] sm:$0xf]
    %v1401 = vld [vmem:[%s1392 + $0x20] sm:$0xf]
    %v1402 = vld [vmem:[%s1392 + $0x24] sm:$0xf]
    %v1403 = vld [vmem:[%s1392 + $0x28] sm:$0xf]
    %v1404 = vld [vmem:[%s1392 + $0x2c] sm:$0xf]
    %v1405 = vld [vmem:[%s1392 + $0x30] sm:$0xf]
    %v1406 = vld [vmem:[%s1392 + $0x34] sm:$0xf]
    %v1407 = vld [vmem:[%s1392 + $0x38] sm:$0xf]
    %v1408 = vld [vmem:[%s1392 + $0x3c] sm:$0xf]
    %s1409 = scalar_lea.vmem %s7, 2
    %v1410 = vld [vmem:[%s1409] sm:$0x1]
    %v1412 = vperm.slane %v1410, 0
    %v1430 = vunpack.c.l.b16 %v1393
    %v1431 = vunpack.c.l.b16 %v1394
    %v1432 = vunpack.c.l.b16 %v1395
    %v1433 = vunpack.c.l.b16 %v1396
    %v1434 = vunpack.c.l.b16 %v1397
    %v1435 = vunpack.c.l.b16 %v1398
    %v1436 = vunpack.c.l.b16 %v1399
    %v1437 = vunpack.c.l.b16 %v1400
    %v1438 = vunpack.c.l.b16 %v1401
    %v1439 = vunpack.c.l.b16 %v1402
    %v1440 = vunpack.c.l.b16 %v1403
    %v1441 = vunpack.c.l.b16 %v1404
    %v1442 = vunpack.c.l.b16 %v1405
    %v1443 = vunpack.c.l.b16 %v1406
    %v1444 = vunpack.c.l.b16 %v1407
    %v1445 = vunpack.c.l.b16 %v1408
    %v1446 = vpack.c.b16 %v1431, %v1430
    %v1447 = vpack.c.b16 %v1433, %v1432
    %v1448 = vpack.c.b16 %v1435, %v1434
    %v1449 = vpack.c.b16 %v1437, %v1436
    %v1450 = vpack.c.b16 %v1439, %v1438
    %v1451 = vpack.c.b16 %v1441, %v1440
    %v1452 = vpack.c.b16 %v1443, %v1442
    %v1453 = vpack.c.b16 %v1445, %v1444
    %1462 = vmatpush.bf16.msra.mxu0 %v1453
    %1463 = vmatpush.bf16.msra.mxu0 %v1452
    %1464 = vmatpush.bf16.msra.mxu0 %v1451
    %1465 = vmatpush.bf16.msra.mxu0 %v1450
    %1466 = vmatpush.bf16.msra.mxu0 %v1449
    %1467 = vmatpush.bf16.msra.mxu0 %v1448
    %1468 = vmatpush.bf16.msra.mxu0 %v1447
    %1469 = vmatpush.bf16.msra.mxu0 %v1446
    %1470 = vmatmul.bf16.gmra.mxu0 %v1391
    %v1471 = vpop.f32.mrf.mxu0
    %v1472 = vadd.f32 %v1412, %v1471
    %v1473 = vpop.f32.mrf.mxu0
    %1474 = vdwg.mxu0
    %v1475 = vmax.f32 %v1472, 0.0
    %v1476 = vpack.c.bf16 %v1475, %v1475
    %s1477 = scalar_lea.vmem [#allocation14], 128
    %v1478 = vld [vmem:[%s1477] sm:$0xf]
    %v1479 = vld [vmem:[%s1477 + $0x4] sm:$0xf]
    %v1480 = vld [vmem:[%s1477 + $0x8] sm:$0xf]
    %v1481 = vld [vmem:[%s1477 + $0xc] sm:$0xf]
    %v1482 = vld [vmem:[%s1477 + $0x10] sm:$0xf]
    %v1483 = vld [vmem:[%s1477 + $0x14] sm:$0xf]
    %v1484 = vld [vmem:[%s1477 + $0x18] sm:$0xf]
    %v1485 = vld [vmem:[%s1477 + $0x1c] sm:$0xf]
    %v1486 = vld [vmem:[%s1477 + $0x20] sm:$0xf]
    %v1487 = vld [vmem:[%s1477 + $0x24] sm:$0xf]
    %v1488 = vld [vmem:[%s1477 + $0x28] sm:$0xf]
    %v1489 = vld [vmem:[%s1477 + $0x2c] sm:$0xf]
    %v1490 = vld [vmem:[%s1477 + $0x30] sm:$0xf]
    %v1491 = vld [vmem:[%s1477 + $0x34] sm:$0xf]
    %v1492 = vld [vmem:[%s1477 + $0x38] sm:$0xf]
    %v1493 = vld [vmem:[%s1477 + $0x3c] sm:$0xf]
    %s1494 = scalar_lea.vmem [#allocation16], 2
    %v1495 = vld [vmem:[%s1494] sm:$0x1]
    %v1497 = vperm.slane %v1495, 0
    %v1515 = vunpack.c.l.b16 %v1478
    %v1516 = vunpack.c.l.b16 %v1479
    %v1517 = vunpack.c.l.b16 %v1480
    %v1518 = vunpack.c.l.b16 %v1481
    %v1519 = vunpack.c.l.b16 %v1482
    %v1520 = vunpack.c.l.b16 %v1483
    %v1521 = vunpack.c.l.b16 %v1484
    %v1522 = vunpack.c.l.b16 %v1485
    %v1523 = vunpack.c.l.b16 %v1486
    %v1524 = vunpack.c.l.b16 %v1487
    %v1525 = vunpack.c.l.b16 %v1488
    %v1526 = vunpack.c.l.b16 %v1489
    %v1527 = vunpack.c.l.b16 %v1490
    %v1528 = vunpack.c.l.b16 %v1491
    %v1529 = vunpack.c.l.b16 %v1492
    %v1530 = vunpack.c.l.b16 %v1493
    %v1531 = vpack.c.b16 %v1516, %v1515
    %v1532 = vpack.c.b16 %v1518, %v1517
    %v1533 = vpack.c.b16 %v1520, %v1519
    %v1534 = vpack.c.b16 %v1522, %v1521
    %v1535 = vpack.c.b16 %v1524, %v1523
    %v1536 = vpack.c.b16 %v1526, %v1525
    %v1537 = vpack.c.b16 %v1528, %v1527
    %v1538 = vpack.c.b16 %v1530, %v1529
    %1547 = vmatpush.bf16.msra.mxu0 %v1538
    %1548 = vmatpush.bf16.msra.mxu0 %v1537
    %1549 = vmatpush.bf16.msra.mxu0 %v1536
    %1550 = vmatpush.bf16.msra.mxu0 %v1535
    %1551 = vmatpush.bf16.msra.mxu0 %v1534
    %1552 = vmatpush.bf16.msra.mxu0 %v1533
    %1553 = vmatpush.bf16.msra.mxu0 %v1532
    %1554 = vmatpush.bf16.msra.mxu0 %v1531
    %1555 = vmatmul.bf16.gmra.mxu0 %v1476
    %v1556 = vpop.f32.mrf.mxu0
    %v1557 = vadd.f32 %v1497, %v1556
    %v1558 = vpop.f32.mrf.mxu0
    %1559 = vdwg.mxu0
    %v1560 = vld [vmem:[#allocation17] sm:$0xff]
    %v1561 = vxor.u32 %v1557, 2147483648
    %v1562 = vmul.f32 %v1561, 1.442695
    %v1563 = vpow.pop %v1562
    %v1564 = vadd.f32 %v1563, 1.0
    %v1565 = vrcp.pop %v1564
    %v1566 = vmul.f32 %v1564, %v1565
    %v1567 = vsub.f32 1.0, %v1566
    %v1568 = vmul.f32 %v1565, %v1567
    %v1569 = vadd.f32 %v1565, %v1568
    %vm1570 = vweird.f32 %v1564
    %vm1571 = vweird.f32 %v1565
    %vm1572 = vmor %vm1570, %vm1571
    %v1573 = vsel %vm1572, %v1565, %v1569
    %v1574 = vand.u32 2147483647, %v1564
    %vm1575 = vcmp.eq.f32.partialorder %v1574, 8.507059e+37
    %v1576 = vand.u32 %v1564, 2147483648
    %v1577 = vor.u32 1.1754944e-38, %v1576
    %v1578 = vsel %vm1575, %v1577, %v1573
    %v1579 = vmul.f32 1.0, %v1578
    %v1580 = vadd.f32 %v1560, %v1579
    %1581 = vst [vmem:[#allocation17] sm:$0xff] %v1580
    // Predicated region
    $region86: #{tpu_custom_call.1} parent=1 // pred_check
      %p1582 = pneg %p178
    $region87: #{tpu_custom_call.1} parent=1 // pred_check_branch
      %1584 = sbr.rel (%p1582) target = $region89
    $region88: #{tpu_custom_call.1} parent=1 // pred_region
      %v1585 = vld [vmem:[#allocation17] sm:$0xff]
      %v1586 = vmul.f32 %v1585, 0.33333334
      %1587 = vst [vmem:[#allocation17] sm:$0xff] %v1586
    $region89: #{tpu_custom_call.1} parent=1 // pred_fallthru
      _
    // Predicated region
    $region90: #{tpu_custom_call.1} parent=1 // pred_check
      _
    $region91: #{tpu_custom_call.1} parent=1 // pred_check_branch
      %1589 = sbr.rel (0) target = $region93
    $region92: #{tpu_custom_call.1} parent=1 // pred_region
      %1591 = vsyncadd [#allocation4], 0
      %s1593 = sshll.u32 [#allocation17], 4
      %s1594 = int_to_ptr.vmem [resolvable:$true] %s1593
      %s1595 = sshll.u32 %s11, 4
      %s1596 = int_to_ptr.hbm [resolvable:$true] %s1595
      %1598 = dma.vmem_to_hbm [thread:$0]  %s1594, 128, %s1596, [#allocation4]
    $region93: #{tpu_custom_call.1} parent=1 // pred_fallthru
      _
    // Predicated region
    $region94: #{tpu_custom_call.1} parent=1 // pred_check
      _
    $region95: #{tpu_custom_call.1} parent=1 // pred_check_branch
      %1600 = sbr.rel (0) target = $region97
    $region96: #{tpu_custom_call.1} parent=1 // pred_region
      %1602 = dma.done [#allocation4], 128
    $region97: #{tpu_custom_call.1} parent=1 // pred_fallthru
      _
    %1603 = vsyncpa [#allocation3], 1
    %1604 = vsyncpa [#allocation6], 1
    %1605 = vsyncpa [#allocation9], 1
    %1606 = vsyncpa [#allocation12], 1
    %1607 = vsyncpa [#allocation15], 1
    %1608 = vsyncpa [#allocation4], 1

</llo_original>
